<compile_context>
chip_gen: v5e
topology: v5e:2x2
jax: 0.10.0
libtpu: 0.0.40
codegen_flags: <defaults>
</compile_context>

<pallas_src>
import numpy as np
import jax
import jax.numpy as jnp
from jax import lax
from jax.experimental import pallas as pl
from jax.experimental.pallas import tpu as pltpu

KH = 3          # kernel_size (height) -> padding KH//2 along H
KW = 3          # fixed width-3 kernel in the module -> no W padding
EPS = 1e-5
LANES = 128
SUB = 8         # f32 sublane tile


def _round_up(x, m):
    return (x + m - 1) // m * m


def _bn_relu(z, mask, inv_cnt, gamma, beta):
    """Training-mode BatchNorm + ReLU folded to one FMA per element.

    Two-pass (shifted) masked statistics in f32 (review correctness item):
    z:     (C, LP)  conv output incl. junk columns
    mask:  (1, LP)  1.0 on columns inside the true (N, H, Wout) extent
    """
    zm = z * mask
    mean = jnp.sum(zm, axis=1, keepdims=True) * inv_cnt      # (C, 1)
    d = (z - mean) * mask
    var = jnp.sum(d * d, axis=1, keepdims=True) * inv_cnt    # biased variance
    scale = gamma * lax.rsqrt(var + EPS)                     # rsqrt -> EUP
    shift = beta - mean * scale
    return jnp.maximum(z * scale + shift, 0.0)               # one FMA + relu


def down_unet2d_block(x_nchw, params, *, matmul_dtype=jnp.bfloat16):
    """PyTorch-equivalent forward.  x_nchw: (N, Cin, H, W) -> (N, Cend, H, W-4)."""
    w1, b1, g1, be1, w2, b2, g2, be2 = params
    del b1, b2          # conv biases cancel inside training-mode BatchNorm
    n, cin, h, w = x_nchw.shape
    cmid = w1.shape[0]
    cend = w2.shape[0]
    ph = KH // 2
    hp = h + 2 * ph
    w1_out = w - (KW - 1)
    w2_out = w1_out - (KW - 1)

    cin_p = _round_up(cin, SUB)          # pad channels so im2col blocks are tile-aligned
    cmid_p = _round_up(cmid, SUB)

    L = n * hp * w                       # real flattened columns
    LP = _round_up(L, LANES)             # lane-dense compute width
    max_shift = ph * w + KW // 2         # largest |tap shift|
    slack = _round_up(max_shift, LANES)
    wtot = slack + LP + slack
    assert slack >= max_shift            # conv2 halo reads stay inside the zero slack

    inv_c1 = 1.0 / float(n * h * w1_out)   # true BN1 element count
    inv_c2 = 1.0 / float(n * h * w2_out)   # true BN2 element count

    # ---------- wrapper-side layout prep (tiny arrays, fused by XLA) ----------
    # TODO(synk): fold these pads/transposes into the kernel DMA when gridified.
    xpad = jnp.pad(x_nchw.astype(jnp.float32),
                   ((0, 0), (0, cin_p - cin), (ph, ph), (0, 0)))
    x_flat = jnp.transpose(xpad, (1, 0, 2, 3)).reshape(cin_p, L)      # (Cin_p, L)
    x_wide = jnp.pad(x_flat, ((0, 0), (slack, wtot - slack - L)))     # (Cin_p, wtot)

    # weights OIHW -> single 2-D tile (Cout_p, KH*KW*Cin_p), zero-padded, bf16
    def flatten_weight(wgt, ci_pad, co_pad):
        co, ci = wgt.shape[0], wgt.shape[1]
        wt = jnp.transpose(wgt.astype(jnp.float32), (0, 2, 3, 1))     # (co,KH,KW,ci)
        wt = jnp.pad(wt, ((0, co_pad - co), (0, 0), (0, 0), (0, ci_pad - ci)))
        return wt.reshape(co_pad, KH * KW * ci_pad).astype(matmul_dtype)

    w1_flat = flatten_weight(w1, cin_p, cmid_p)        # (Cmid_p, 9*Cin_p)
    w2_flat = flatten_weight(w2, cmid_p, cend)         # (Cend,   9*Cmid_p)

    def pad_affine(v, c_pad, fill):
        vp = jnp.pad(v.astype(jnp.float32), (0, c_pad - v.shape[0]),
                     constant_values=fill)
        return vp.reshape(-1, 1)

    g1p, be1p = pad_affine(g1, cmid_p, 1.0), pad_affine(be1, cmid_p, 0.0)
    g2p = g2.reshape(-1, 1).astype(jnp.float32)
    be2p = be2.reshape(-1, 1).astype(jnp.float32)

    # validity masks over the LP flattened columns (static numpy constants)
    def make_mask(w_lo, width):
        m = np.zeros((n, hp, w), np.float32)
        m[:, ph:ph + h, w_lo:w_lo + width] = 1.0
        out = np.zeros((1, LP), np.float32)
        out[0, :L] = m.reshape(-1)
        return jnp.asarray(out)

    mask1 = make_mask(KW // 2, w1_out)       # valid y1 columns
    mask2 = make_mask(KW - 1, w2_out)        # valid y2 columns

    # tap -> constant column shift in the flattened layout (order = kh*KW+kw,
    # matching the weight flattening above)
    taps = [(kh - ph) * w + (kw - KW // 2) for kh in range(KH) for kw in range(KW)]
    k1 = KH * KW * cin_p
    k2 = KH * KW * cmid_p

    def kernel(x_ref, w1_ref, g1_ref, be1_ref, w2_ref, g2_ref, be2_ref,
               m1_ref, m2_ref, o_ref, y1_scr, im1_scr, im2_scr):
        # ---- conv1: stage im2col once (aligned full-tile stores), one MXU dot ----
        for t, s in enumerate(taps):
            im1_scr[t * cin_p:(t + 1) * cin_p, :] = \
                x_ref[:, slack + s: slack + s + LP]
        z1 = jnp.dot(w1_ref[...], im1_scr[...].astype(matmul_dtype),
                     preferred_element_type=jnp.float32)            # (Cmid_p, LP)

        m1 = m1_ref[...]
        # BN1 + ReLU; multiply by mask so halo / junk columns are exactly zero
        # (this provides the per-sample H zero-padding that conv2 needs).
        y1 = _bn_relu(z1, m1, inv_c1, g1_ref[...], be1_ref[...]) * m1

        # stage y1 with zeroed slack halos (only the 128-lane-aligned slack
        # regions are zero-filled -> unmasked stores)
        y1_scr[:, :slack] = jnp.zeros((cmid_p, slack), jnp.float32)
        y1_scr[:, slack + LP:wtot] = jnp.zeros((cmid_p, wtot - slack - LP),
                                               jnp.float32)
        y1_scr[:, slack:slack + LP] = y1

        # ---- conv2: stage im2col once, one MXU dot ----
        for t, s in enumerate(taps):
            im2_scr[t * cmid_p:(t + 1) * cmid_p, :] = \
                y1_scr[:, slack + s: slack + s + LP]
        z2 = jnp.dot(w2_ref[...], im2_scr[...].astype(matmul_dtype),
                     preferred_element_type=jnp.float32)             # (Cend, LP)

        # BN2 + ReLU; lane-dense (Cend, LP) output store
        o_ref[...] = _bn_relu(z2, m2_ref[...], inv_c2, g2_ref[...], be2_ref[...])

    vmem = pl.BlockSpec(memory_space=pltpu.MemorySpace.VMEM)
    out_flat = pl.pallas_call(
        kernel,
        out_shape=jax.ShapeDtypeStruct((cend, LP), jnp.float32),
        in_specs=[vmem] * 9,
        out_specs=vmem,
        scratch_shapes=[
            pltpu.VMEM((cmid_p, wtot), jnp.float32),   # y1 staging (with halos)
            pltpu.VMEM((k1, LP), jnp.float32),         # im2col for conv1
            pltpu.VMEM((k2, LP), jnp.float32),         # im2col for conv2
        ],
    )(x_wide, w1_flat, g1p, be1p, w2_flat, g2p, be2p, mask1, mask2)

    # un-flatten, keep the valid (H, W-4) window, return NCHW
    out4 = out_flat[:, :L].reshape(cend, n, hp, w)
    out = out4[:, :, ph:ph + h, (KW - 1):(KW - 1) + w2_out]
    return jnp.transpose(out, (1, 0, 2, 3))


def init_params(key, cin, cmid, cend):
    """Deterministic, PyTorch-shaped parameter init (OIHW conv weights)."""
    ks = jax.random.split(key, 8)

    def conv_init(kweight, kbias, ci, co):
        fan_in = ci * KH * KW
        bound = 1.0 / np.sqrt(fan_in)
        wgt = jax.random.uniform(kweight, (co, ci, KH, KW), jnp.float32, -bound, bound)
        bias = jax.random.uniform(kbias, (co,), jnp.float32, -bound, bound)
        return wgt, bias

    w1, b1 = conv_init(ks[0], ks[1], cin, cmid)
    w2, b2 = conv_init(ks[2], ks[3], cmid, cend)
    g1 = 1.0 + 0.1 * jax.random.normal(ks[4], (cmid,), jnp.float32)
    be1 = 0.1 * jax.random.normal(ks[5], (cmid,), jnp.float32)
    g2 = 1.0 + 0.1 * jax.random.normal(ks[6], (cend,), jnp.float32)
    be2 = 0.1 * jax.random.normal(ks[7], (cend,), jnp.float32)
    return (w1, b1, g1, be1, w2, b2, g2, be2)


def ref_forward(x_nchw, params):
    """Pure-JAX f32 reference (lax conv + training-mode batch-stat BN)."""
    w1, b1, g1, be1, w2, b2, g2, be2 = params
    ph = KH // 2
    x = x_nchw.astype(jnp.float32)

    def conv(y, wgt, bias):
        dn = lax.conv_dimension_numbers(y.shape, wgt.shape, ("NCHW", "OIHW", "NCHW"))
        return lax.conv_general_dilated(
            y, wgt, (1, 1), ((ph, ph), (0, 0)),
            dimension_numbers=dn) + bias.reshape(1, -1, 1, 1)

    def bn_relu(y, g, b):
        m = y.mean(axis=(0, 2, 3), keepdims=True)
        v = ((y - m) ** 2).mean(axis=(0, 2, 3), keepdims=True)
        return jnp.maximum((y - m) / jnp.sqrt(v + EPS) * g.reshape(1, -1, 1, 1)
                           + b.reshape(1, -1, 1, 1), 0.0)

    y = bn_relu(conv(x, w1, b1), g1, be1)
    y = bn_relu(conv(y, w2, b2), g2, be2)
    return y


if __name__ == "__main__":
    key = jax.random.PRNGKey(0)
    kx, kp = jax.random.split(key)

    N, CIN, H, W = 2, 4, 16, 16          # small shapes; initial_filters=4
    CMID, CEND = 8, 8                    # mid_filters = end_filters = 8

    x = jax.random.normal(kx, (N, CIN, H, W), jnp.float32)
    params = init_params(kp, CIN, CMID, CEND)

    out = down_unet2d_block(x, params)   # bf16 MXU operands, f32 accumulate/BN
    out = jax.block_until_ready(out)

    assert out.shape == (N, CEND, H, W - 4), out.shape
    ref = ref_forward(x, params)
    # Tolerance reflects bf16 conv operands (f32 accumulation + f32 BN);
    # outputs are batch-normalized, i.e. O(1) scale.
    np.testing.assert_allclose(np.asarray(out), np.asarray(ref),
                               rtol=3e-2, atol=3e-2)

    print("KERNEL_OK")
</pallas_src>

<mosaic_0001>
module attributes {stable_mosaic.version = 11 : i64} {
  func.func @kernel(%arg0: memref<8x896xf32, #tpu.memory_space<vmem>>, %arg1: memref<8x72xbf16, #tpu.memory_space<vmem>>, %arg2: memref<8x1xf32, #tpu.memory_space<vmem>>, %arg3: memref<8x1xf32, #tpu.memory_space<vmem>>, %arg4: memref<8x72xbf16, #tpu.memory_space<vmem>>, %arg5: memref<8x1xf32, #tpu.memory_space<vmem>>, %arg6: memref<8x1xf32, #tpu.memory_space<vmem>>, %arg7: memref<1x640xf32, #tpu.memory_space<vmem>>, %arg8: memref<1x640xf32, #tpu.memory_space<vmem>>, %arg9: memref<8x640xf32, #tpu.memory_space<vmem>>, %arg10: memref<8x896xf32, #tpu.memory_space<vmem>>, %arg11: memref<72x640xf32, #tpu.memory_space<vmem>>, %arg12: memref<72x640xf32, #tpu.memory_space<vmem>>) attributes {dimension_semantics = [], scalar_prefetch = 0 : i64, scratch_operands = 3 : i64, tpu.core_type = #tpu.core_type<tc>} {
    %c0 = arith.constant 0 : index
    %c111 = arith.constant 111 : index
    %0 = vector.load %arg0[%c0, %c111] : memref<8x896xf32, #tpu.memory_space<vmem>>, vector<8x640xf32>
    %c0_0 = arith.constant 0 : index
    %c0_1 = arith.constant 0 : index
    %1 = vector.load %arg11[%c0_0, %c0_1] : memref<72x640xf32, #tpu.memory_space<vmem>>, vector<8x640xf32>
    tpu.vector_store %arg11[%c0_0, %c0_1], %0 {strides = array<i32>} : memref<72x640xf32, #tpu.memory_space<vmem>>, vector<8x640xf32>,
    %c0_2 = arith.constant 0 : index
    %c112 = arith.constant 112 : index
    %2 = vector.load %arg0[%c0_2, %c112] : memref<8x896xf32, #tpu.memory_space<vmem>>, vector<8x640xf32>
    %c8 = arith.constant 8 : index
    %c0_3 = arith.constant 0 : index
    %3 = vector.load %arg11[%c8, %c0_3] : memref<72x640xf32, #tpu.memory_space<vmem>>, vector<8x640xf32>
    tpu.vector_store %arg11[%c8, %c0_3], %2 {strides = array<i32>} : memref<72x640xf32, #tpu.memory_space<vmem>>, vector<8x640xf32>,
    %c0_4 = arith.constant 0 : index
    %c113 = arith.constant 113 : index
    %4 = vector.load %arg0[%c0_4, %c113] : memref<8x896xf32, #tpu.memory_space<vmem>>, vector<8x640xf32>
    %c16 = arith.constant 16 : index
    %c0_5 = arith.constant 0 : index
    %5 = vector.load %arg11[%c16, %c0_5] : memref<72x640xf32, #tpu.memory_space<vmem>>, vector<8x640xf32>
    tpu.vector_store %arg11[%c16, %c0_5], %4 {strides = array<i32>} : memref<72x640xf32, #tpu.memory_space<vmem>>, vector<8x640xf32>,
    %c0_6 = arith.constant 0 : index
    %c127 = arith.constant 127 : index
    %6 = vector.load %arg0[%c0_6, %c127] : memref<8x896xf32, #tpu.memory_space<vmem>>, vector<8x640xf32>
    %c24 = arith.constant 24 : index
    %c0_7 = arith.constant 0 : index
    %7 = vector.load %arg11[%c24, %c0_7] : memref<72x640xf32, #tpu.memory_space<vmem>>, vector<8x640xf32>
    tpu.vector_store %arg11[%c24, %c0_7], %6 {strides = array<i32>} : memref<72x640xf32, #tpu.memory_space<vmem>>, vector<8x640xf32>,
    %c0_8 = arith.constant 0 : index
    %c128 = arith.constant 128 : index
    %8 = vector.load %arg0[%c0_8, %c128] : memref<8x896xf32, #tpu.memory_space<vmem>>, vector<8x640xf32>
    %c32 = arith.constant 32 : index
    %c0_9 = arith.constant 0 : index
    %9 = vector.load %arg11[%c32, %c0_9] : memref<72x640xf32, #tpu.memory_space<vmem>>, vector<8x640xf32>
    tpu.vector_store %arg11[%c32, %c0_9], %8 {strides = array<i32>} : memref<72x640xf32, #tpu.memory_space<vmem>>, vector<8x640xf32>,
    %c0_10 = arith.constant 0 : index
    %c129 = arith.constant 129 : index
    %10 = vector.load %arg0[%c0_10, %c129] : memref<8x896xf32, #tpu.memory_space<vmem>>, vector<8x640xf32>
    %c40 = arith.constant 40 : index
    %c0_11 = arith.constant 0 : index
    %11 = vector.load %arg11[%c40, %c0_11] : memref<72x640xf32, #tpu.memory_space<vmem>>, vector<8x640xf32>
    tpu.vector_store %arg11[%c40, %c0_11], %10 {strides = array<i32>} : memref<72x640xf32, #tpu.memory_space<vmem>>, vector<8x640xf32>,
    %c0_12 = arith.constant 0 : index
    %c143 = arith.constant 143 : index
    %12 = vector.load %arg0[%c0_12, %c143] : memref<8x896xf32, #tpu.memory_space<vmem>>, vector<8x640xf32>
    %c48 = arith.constant 48 : index
    %c0_13 = arith.constant 0 : index
    %13 = vector.load %arg11[%c48, %c0_13] : memref<72x640xf32, #tpu.memory_space<vmem>>, vector<8x640xf32>
    tpu.vector_store %arg11[%c48, %c0_13], %12 {strides = array<i32>} : memref<72x640xf32, #tpu.memory_space<vmem>>, vector<8x640xf32>,
    %c0_14 = arith.constant 0 : index
    %c144 = arith.constant 144 : index
    %14 = vector.load %arg0[%c0_14, %c144] : memref<8x896xf32, #tpu.memory_space<vmem>>, vector<8x640xf32>
    %c56 = arith.constant 56 : index
    %c0_15 = arith.constant 0 : index
    %15 = vector.load %arg11[%c56, %c0_15] : memref<72x640xf32, #tpu.memory_space<vmem>>, vector<8x640xf32>
    tpu.vector_store %arg11[%c56, %c0_15], %14 {strides = array<i32>} : memref<72x640xf32, #tpu.memory_space<vmem>>, vector<8x640xf32>,
    %c0_16 = arith.constant 0 : index
    %c145 = arith.constant 145 : index
    %16 = vector.load %arg0[%c0_16, %c145] : memref<8x896xf32, #tpu.memory_space<vmem>>, vector<8x640xf32>
    %c64 = arith.constant 64 : index
    %c0_17 = arith.constant 0 : index
    %17 = vector.load %arg11[%c64, %c0_17] : memref<72x640xf32, #tpu.memory_space<vmem>>, vector<8x640xf32>
    tpu.vector_store %arg11[%c64, %c0_17], %16 {strides = array<i32>} : memref<72x640xf32, #tpu.memory_space<vmem>>, vector<8x640xf32>,
    %c0_18 = arith.constant 0 : index
    %c0_19 = arith.constant 0 : index
    %18 = vector.load %arg1[%c0_18, %c0_19] : memref<8x72xbf16, #tpu.memory_space<vmem>>, vector<8x72xbf16>
    %c0_20 = arith.constant 0 : index
    %c0_21 = arith.constant 0 : index
    %19 = vector.load %arg11[%c0_20, %c0_21] : memref<72x640xf32, #tpu.memory_space<vmem>>, vector<72x640xf32>
    %20 = arith.truncf %19 : vector<72x640xf32> to vector<72x640xbf16>
    %cst = arith.constant dense<0.000000e+00> : vector<8x640xf32>
    %21 = tpu.matmul %18, %20, %cst {dimension_numbers = #tpu.dot_dimension_numbers<[1], [0], [0], [1], [0, 0, 1, 1], [], []>} : vector<8x72xbf16>, vector<72x640xbf16>, vector<8x640xf32> -> vector<8x640xf32>
    %c0_22 = arith.constant 0 : index
    %c0_23 = arith.constant 0 : index
    %22 = vector.load %arg7[%c0_22, %c0_23] : memref<1x640xf32, #tpu.memory_space<vmem>>, vector<1x640xf32>
    %c0_24 = arith.constant 0 : index
    %c0_25 = arith.constant 0 : index
    %23 = vector.load %arg2[%c0_24, %c0_25] : memref<8x1xf32, #tpu.memory_space<vmem>>, vector<8x1xf32>
    %c0_26 = arith.constant 0 : index
    %c0_27 = arith.constant 0 : index
    %24 = vector.load %arg3[%c0_26, %c0_27] : memref<8x1xf32, #tpu.memory_space<vmem>>, vector<8x1xf32>
    %25 = vector.broadcast %22 : vector<1x640xf32> to vector<8x640xf32>
    %26 = arith.mulf %21, %25 : vector<8x640xf32>
    %cst_28 = arith.constant dense<0.000000e+00> : vector<8xf32>
    %27 = vector.multi_reduction <add>, %26, %cst_28 [1] : vector<8x640xf32> to vector<8xf32>
    %28 = vector.shape_cast %27 : vector<8xf32> to vector<8x1xf32>
    %cst_29 = arith.constant 0.00223214296 : f32
    %29 = vector.broadcast %cst_29 : f32 to vector<8x1xf32>
    %30 = arith.mulf %28, %29 : vector<8x1xf32>
    %31 = vector.broadcast %30 : vector<8x1xf32> to vector<8x640xf32>
    %32 = arith.subf %21, %31 : vector<8x640xf32>
    %33 = vector.broadcast %22 : vector<1x640xf32> to vector<8x640xf32>
    %34 = arith.mulf %32, %33 : vector<8x640xf32>
    %35 = arith.mulf %34, %34 : vector<8x640xf32>
    %cst_30 = arith.constant dense<0.000000e+00> : vector<8xf32>
    %36 = vector.multi_reduction <add>, %35, %cst_30 [1] : vector<8x640xf32> to vector<8xf32>
    %37 = vector.shape_cast %36 : vector<8xf32> to vector<8x1xf32>
    %cst_31 = arith.constant 0.00223214296 : f32
    %38 = vector.broadcast %cst_31 : f32 to vector<8x1xf32>
    %39 = arith.mulf %37, %38 : vector<8x1xf32>
    %cst_32 = arith.constant 9.99999974E-6 : f32
    %40 = vector.broadcast %cst_32 : f32 to vector<8x1xf32>
    %41 = arith.addf %39, %40 : vector<8x1xf32>
    %42 = math.rsqrt %41 : vector<8x1xf32>
    %43 = arith.mulf %23, %42 : vector<8x1xf32>
    %44 = arith.mulf %30, %43 : vector<8x1xf32>
    %45 = arith.subf %24, %44 : vector<8x1xf32>
    %46 = vector.broadcast %43 : vector<8x1xf32> to vector<8x640xf32>
    %47 = arith.mulf %21, %46 : vector<8x640xf32>
    %48 = vector.broadcast %45 : vector<8x1xf32> to vector<8x640xf32>
    %49 = arith.addf %47, %48 : vector<8x640xf32>
    %cst_33 = arith.constant 0.000000e+00 : f32
    %50 = vector.broadcast %cst_33 : f32 to vector<8x640xf32>
    %51 = arith.maximumf %49, %50 : vector<8x640xf32>
    %52 = vector.broadcast %22 : vector<1x640xf32> to vector<8x640xf32>
    %53 = arith.mulf %51, %52 : vector<8x640xf32>
    %cst_34 = arith.constant 0.000000e+00 : f32
    %54 = vector.broadcast %cst_34 : f32 to vector<8x128xf32>
    %c0_35 = arith.constant 0 : index
    %c0_36 = arith.constant 0 : index
    %55 = vector.load %arg10[%c0_35, %c0_36] : memref<8x896xf32, #tpu.memory_space<vmem>>, vector<8x128xf32>
    tpu.vector_store %arg10[%c0_35, %c0_36], %54 {strides = array<i32>} : memref<8x896xf32, #tpu.memory_space<vmem>>, vector<8x128xf32>,
    %cst_37 = arith.constant 0.000000e+00 : f32
    %56 = vector.broadcast %cst_37 : f32 to vector<8x128xf32>
    %c0_38 = arith.constant 0 : index
    %c768 = arith.constant 768 : index
    %57 = vector.load %arg10[%c0_38, %c768] : memref<8x896xf32, #tpu.memory_space<vmem>>, vector<8x128xf32>
    tpu.vector_store %arg10[%c0_38, %c768], %56 {strides = array<i32>} : memref<8x896xf32, #tpu.memory_space<vmem>>, vector<8x128xf32>,
    %c0_39 = arith.constant 0 : index
    %c128_40 = arith.constant 128 : index
    %58 = vector.load %arg10[%c0_39, %c128_40] : memref<8x896xf32, #tpu.memory_space<vmem>>, vector<8x640xf32>
    tpu.vector_store %arg10[%c0_39, %c128_40], %53 {strides = array<i32>} : memref<8x896xf32, #tpu.memory_space<vmem>>, vector<8x640xf32>,
    %c0_41 = arith.constant 0 : index
    %c111_42 = arith.constant 111 : index
    %59 = vector.load %arg10[%c0_41, %c111_42] : memref<8x896xf32, #tpu.memory_space<vmem>>, vector<8x640xf32>
    %c0_43 = arith.constant 0 : index
    %c0_44 = arith.constant 0 : index
    %60 = vector.load %arg12[%c0_43, %c0_44] : memref<72x640xf32, #tpu.memory_space<vmem>>, vector<8x640xf32>
    tpu.vector_store %arg12[%c0_43, %c0_44], %59 {strides = array<i32>} : memref<72x640xf32, #tpu.memory_space<vmem>>, vector<8x640xf32>,
    %c0_45 = arith.constant 0 : index
    %c112_46 = arith.constant 112 : index
    %61 = vector.load %arg10[%c0_45, %c112_46] : memref<8x896xf32, #tpu.memory_space<vmem>>, vector<8x640xf32>
    %c8_47 = arith.constant 8 : index
    %c0_48 = arith.constant 0 : index
    %62 = vector.load %arg12[%c8_47, %c0_48] : memref<72x640xf32, #tpu.memory_space<vmem>>, vector<8x640xf32>
    tpu.vector_store %arg12[%c8_47, %c0_48], %61 {strides = array<i32>} : memref<72x640xf32, #tpu.memory_space<vmem>>, vector<8x640xf32>,
    %c0_49 = arith.constant 0 : index
    %c113_50 = arith.constant 113 : index
    %63 = vector.load %arg10[%c0_49, %c113_50] : memref<8x896xf32, #tpu.memory_space<vmem>>, vector<8x640xf32>
    %c16_51 = arith.constant 16 : index
    %c0_52 = arith.constant 0 : index
    %64 = vector.load %arg12[%c16_51, %c0_52] : memref<72x640xf32, #tpu.memory_space<vmem>>, vector<8x640xf32>
    tpu.vector_store %arg12[%c16_51, %c0_52], %63 {strides = array<i32>} : memref<72x640xf32, #tpu.memory_space<vmem>>, vector<8x640xf32>,
    %c0_53 = arith.constant 0 : index
    %c127_54 = arith.constant 127 : index
    %65 = vector.load %arg10[%c0_53, %c127_54] : memref<8x896xf32, #tpu.memory_space<vmem>>, vector<8x640xf32>
    %c24_55 = arith.constant 24 : index
    %c0_56 = arith.constant 0 : index
    %66 = vector.load %arg12[%c24_55, %c0_56] : memref<72x640xf32, #tpu.memory_space<vmem>>, vector<8x640xf32>
    tpu.vector_store %arg12[%c24_55, %c0_56], %65 {strides = array<i32>} : memref<72x640xf32, #tpu.memory_space<vmem>>, vector<8x640xf32>,
    %c0_57 = arith.constant 0 : index
    %c128_58 = arith.constant 128 : index
    %67 = vector.load %arg10[%c0_57, %c128_58] : memref<8x896xf32, #tpu.memory_space<vmem>>, vector<8x640xf32>
    %c32_59 = arith.constant 32 : index
    %c0_60 = arith.constant 0 : index
    %68 = vector.load %arg12[%c32_59, %c0_60] : memref<72x640xf32, #tpu.memory_space<vmem>>, vector<8x640xf32>
    tpu.vector_store %arg12[%c32_59, %c0_60], %67 {strides = array<i32>} : memref<72x640xf32, #tpu.memory_space<vmem>>, vector<8x640xf32>,
    %c0_61 = arith.constant 0 : index
    %c129_62 = arith.constant 129 : index
    %69 = vector.load %arg10[%c0_61, %c129_62] : memref<8x896xf32, #tpu.memory_space<vmem>>, vector<8x640xf32>
    %c40_63 = arith.constant 40 : index
    %c0_64 = arith.constant 0 : index
    %70 = vector.load %arg12[%c40_63, %c0_64] : memref<72x640xf32, #tpu.memory_space<vmem>>, vector<8x640xf32>
    tpu.vector_store %arg12[%c40_63, %c0_64], %69 {strides = array<i32>} : memref<72x640xf32, #tpu.memory_space<vmem>>, vector<8x640xf32>,
    %c0_65 = arith.constant 0 : index
    %c143_66 = arith.constant 143 : index
    %71 = vector.load %arg10[%c0_65, %c143_66] : memref<8x896xf32, #tpu.memory_space<vmem>>, vector<8x640xf32>
    %c48_67 = arith.constant 48 : index
    %c0_68 = arith.constant 0 : index
    %72 = vector.load %arg12[%c48_67, %c0_68] : memref<72x640xf32, #tpu.memory_space<vmem>>, vector<8x640xf32>
    tpu.vector_store %arg12[%c48_67, %c0_68], %71 {strides = array<i32>} : memref<72x640xf32, #tpu.memory_space<vmem>>, vector<8x640xf32>,
    %c0_69 = arith.constant 0 : index
    %c144_70 = arith.constant 144 : index
    %73 = vector.load %arg10[%c0_69, %c144_70] : memref<8x896xf32, #tpu.memory_space<vmem>>, vector<8x640xf32>
    %c56_71 = arith.constant 56 : index
    %c0_72 = arith.constant 0 : index
    %74 = vector.load %arg12[%c56_71, %c0_72] : memref<72x640xf32, #tpu.memory_space<vmem>>, vector<8x640xf32>
    tpu.vector_store %arg12[%c56_71, %c0_72], %73 {strides = array<i32>} : memref<72x640xf32, #tpu.memory_space<vmem>>, vector<8x640xf32>,
    %c0_73 = arith.constant 0 : index
    %c145_74 = arith.constant 145 : index
    %75 = vector.load %arg10[%c0_73, %c145_74] : memref<8x896xf32, #tpu.memory_space<vmem>>, vector<8x640xf32>
    %c64_75 = arith.constant 64 : index
    %c0_76 = arith.constant 0 : index
    %76 = vector.load %arg12[%c64_75, %c0_76] : memref<72x640xf32, #tpu.memory_space<vmem>>, vector<8x640xf32>
    tpu.vector_store %arg12[%c64_75, %c0_76], %75 {strides = array<i32>} : memref<72x640xf32, #tpu.memory_space<vmem>>, vector<8x640xf32>,
    %c0_77 = arith.constant 0 : index
    %c0_78 = arith.constant 0 : index
    %77 = vector.load %arg4[%c0_77, %c0_78] : memref<8x72xbf16, #tpu.memory_space<vmem>>, vector<8x72xbf16>
    %c0_79 = arith.constant 0 : index
    %c0_80 = arith.constant 0 : index
    %78 = vector.load %arg12[%c0_79, %c0_80] : memref<72x640xf32, #tpu.memory_space<vmem>>, vector<72x640xf32>
    %79 = arith.truncf %78 : vector<72x640xf32> to vector<72x640xbf16>
    %cst_81 = arith.constant dense<0.000000e+00> : vector<8x640xf32>
    %80 = tpu.matmul %77, %79, %cst_81 {dimension_numbers = #tpu.dot_dimension_numbers<[1], [0], [0], [1], [0, 0, 1, 1], [], []>} : vector<8x72xbf16>, vector<72x640xbf16>, vector<8x640xf32> -> vector<8x640xf32>
    %c0_82 = arith.constant 0 : index
    %c0_83 = arith.constant 0 : index
    %81 = vector.load %arg8[%c0_82, %c0_83] : memref<1x640xf32, #tpu.memory_space<vmem>>, vector<1x640xf32>
    %c0_84 = arith.constant 0 : index
    %c0_85 = arith.constant 0 : index
    %82 = vector.load %arg5[%c0_84, %c0_85] : memref<8x1xf32, #tpu.memory_space<vmem>>, vector<8x1xf32>
    %c0_86 = arith.constant 0 : index
    %c0_87 = arith.constant 0 : index
    %83 = vector.load %arg6[%c0_86, %c0_87] : memref<8x1xf32, #tpu.memory_space<vmem>>, vector<8x1xf32>
    %84 = vector.broadcast %81 : vector<1x640xf32> to vector<8x640xf32>
    %85 = arith.mulf %80, %84 : vector<8x640xf32>
    %cst_88 = arith.constant dense<0.000000e+00> : vector<8xf32>
    %86 = vector.multi_reduction <add>, %85, %cst_88 [1] : vector<8x640xf32> to vector<8xf32>
    %87 = vector.shape_cast %86 : vector<8xf32> to vector<8x1xf32>
    %cst_89 = arith.constant 0.00260416674 : f32
    %88 = vector.broadcast %cst_89 : f32 to vector<8x1xf32>
    %89 = arith.mulf %87, %88 : vector<8x1xf32>
    %90 = vector.broadcast %89 : vector<8x1xf32> to vector<8x640xf32>
    %91 = arith.subf %80, %90 : vector<8x640xf32>
    %92 = vector.broadcast %81 : vector<1x640xf32> to vector<8x640xf32>
    %93 = arith.mulf %91, %92 : vector<8x640xf32>
    %94 = arith.mulf %93, %93 : vector<8x640xf32>
    %cst_90 = arith.constant dense<0.000000e+00> : vector<8xf32>
    %95 = vector.multi_reduction <add>, %94, %cst_90 [1] : vector<8x640xf32> to vector<8xf32>
    %96 = vector.shape_cast %95 : vector<8xf32> to vector<8x1xf32>
    %cst_91 = arith.constant 0.00260416674 : f32
    %97 = vector.broadcast %cst_91 : f32 to vector<8x1xf32>
    %98 = arith.mulf %96, %97 : vector<8x1xf32>
    %cst_92 = arith.constant 9.99999974E-6 : f32
    %99 = vector.broadcast %cst_92 : f32 to vector<8x1xf32>
    %100 = arith.addf %98, %99 : vector<8x1xf32>
    %101 = math.rsqrt %100 : vector<8x1xf32>
    %102 = arith.mulf %82, %101 : vector<8x1xf32>
    %103 = arith.mulf %89, %102 : vector<8x1xf32>
    %104 = arith.subf %83, %103 : vector<8x1xf32>
    %105 = vector.broadcast %102 : vector<8x1xf32> to vector<8x640xf32>
    %106 = arith.mulf %80, %105 : vector<8x640xf32>
    %107 = vector.broadcast %104 : vector<8x1xf32> to vector<8x640xf32>
    %108 = arith.addf %106, %107 : vector<8x640xf32>
    %cst_93 = arith.constant 0.000000e+00 : f32
    %109 = vector.broadcast %cst_93 : f32 to vector<8x640xf32>
    %110 = arith.maximumf %108, %109 : vector<8x640xf32>
    %c0_94 = arith.constant 0 : index
    %c0_95 = arith.constant 0 : index
    %111 = vector.load %arg9[%c0_94, %c0_95] : memref<8x640xf32, #tpu.memory_space<vmem>>, vector<8x640xf32>
    tpu.vector_store %arg9[%c0_94, %c0_95], %110 {strides = array<i32>} : memref<8x640xf32, #tpu.memory_space<vmem>>, vector<8x640xf32>,
    return
  }
}

</mosaic_0001>

<llo_original>
// kernel: tpu_custom_call.1
$region0: #{tpu_custom_call.1}
  #allocation0 [shape = 'u32[]', space=smem, size = 0x4, offset = 0x4, fixed_abs, tag = 'smem constant byte address 0x4 - core index']
  #allocation1 [shape = 'u32[72,128]{1,0:T(1,128)}', space=vmem, size = 0x9000, scoped, tag = 'internal scratch']
  #allocation2 [shape = 'f32[8,896]{1,0:T(8,128)}', space=vmem, size = 0x7000, scoped, tag = 'scratch operand']
  #allocation3 [shape = 'f32[72,640]{1,0:T(8,128)}', space=vmem, size = 0x2d000, scoped, tag = 'scratch operand']
  #allocation4 [shape = 'f32[72,640]{1,0:T(8,128)}', space=vmem, size = 0x2d000, scoped, tag = 'scratch operand']
  %s0 = inlined_call_operand.hbm [shape: f32[8,896], index: 0, kind: input, shape index: {}]
  %s1 = inlined_call_operand.vmem [shape: bf16[8,72], index: 1, kind: input, shape index: {}]
  %s2 = inlined_call_operand.vmem [shape: f32[8,1], index: 2, kind: input, shape index: {}]
  %s3 = inlined_call_operand.vmem [shape: f32[8,1], index: 3, kind: input, shape index: {}]
  %s4 = inlined_call_operand.vmem [shape: bf16[8,72], index: 4, kind: input, shape index: {}]
  %s5 = inlined_call_operand.vmem [shape: f32[8,1], index: 5, kind: input, shape index: {}]
  %s6 = inlined_call_operand.vmem [shape: f32[8,1], index: 6, kind: input, shape index: {}]
  %s7 = inlined_call_operand.vmem [shape: f32[1,640], index: 7, kind: input, shape index: {}]
  %s8 = inlined_call_operand.vmem [shape: f32[1,640], index: 8, kind: input, shape index: {}]
  %s9 = inlined_call_operand.hbm [shape: f32[8,640], index: 9, kind: output, shape index: {}]
  %s10 = sld [smem:[#allocation0]]
  $region50: #{tpu_custom_call.1} parent=0
    _
  %s12 = ssub.s32 1, %s10
  %s13 = scalar_select 0, %s12, %s10
  $region1: #{tpu_custom_call.1} parent=0
    #allocation5 [shape = 'u8[28672]{0}', space=vmem, size = 0x7000, scoped, tag = 'input window, operand 0, single buffered']
    #allocation6 [shape = 's32[1]{0}', space=sflag, size = 0x4, scoped, tag = 'scoped memory for tpu_custom_call.1']
    #allocation7 [shape = 's32[1]{0}', space=sflag, size = 0x4, scoped, tag = 'scoped memory for tpu_custom_call.1']
    #allocation8 [shape = 'u8[20480]{0}', space=vmem, size = 0x5000, scoped, tag = 'output window, operand 0, single buffered']
    %14 = vsyncpa [#allocation6], 0
    %15 = vsyncpa [#allocation7], 0
    // Predicated region
    $region2: #{tpu_custom_call.1} parent=1 // pred_check
      _
    $region3: #{tpu_custom_call.1} parent=1 // pred_check_branch
      %17 = sbr.rel (0) target = $region5
    $region4: #{tpu_custom_call.1} parent=1 // pred_region
      %19 = vsyncadd [#allocation6], 0
      %s21 = sshll.u32 %s0, 4
      %s22 = int_to_ptr.hbm [resolvable:$true] %s21
      %s23 = sshll.u32 [#allocation5], 4
      %s24 = int_to_ptr.vmem [resolvable:$true] %s23
      %26 = dma.hbm_to_vmem [thread:$0]  %s22, 896, %s24, [#allocation6]
    $region5: #{tpu_custom_call.1} parent=1 // pred_fallthru
      _
    // Predicated region
    $region6: #{tpu_custom_call.1} parent=1 // pred_check
      _
    $region7: #{tpu_custom_call.1} parent=1 // pred_check_branch
      %28 = sbr.rel (0) target = $region9
    $region8: #{tpu_custom_call.1} parent=1 // pred_region
      _
    $region9: #{tpu_custom_call.1} parent=1 // pred_fallthru
      _
    // Predicated region
    $region10: #{tpu_custom_call.1} parent=1 // pred_check
      _
    $region11: #{tpu_custom_call.1} parent=1 // pred_check_branch
      %30 = sbr.rel (0) target = $region13
    $region12: #{tpu_custom_call.1} parent=1 // pred_region
      _
    $region13: #{tpu_custom_call.1} parent=1 // pred_fallthru
      _
    // Predicated region
    $region14: #{tpu_custom_call.1} parent=1 // pred_check
      _
    $region15: #{tpu_custom_call.1} parent=1 // pred_check_branch
      %32 = sbr.rel (0) target = $region17
    $region16: #{tpu_custom_call.1} parent=1 // pred_region
      _
    $region17: #{tpu_custom_call.1} parent=1 // pred_fallthru
      _
    // Predicated region
    $region18: #{tpu_custom_call.1} parent=1 // pred_check
      _
    $region19: #{tpu_custom_call.1} parent=1 // pred_check_branch
      %34 = sbr.rel (0) target = $region21
    $region20: #{tpu_custom_call.1} parent=1 // pred_region
      _
    $region21: #{tpu_custom_call.1} parent=1 // pred_fallthru
      _
    // Predicated region
    $region22: #{tpu_custom_call.1} parent=1 // pred_check
      _
    $region23: #{tpu_custom_call.1} parent=1 // pred_check_branch
      %36 = sbr.rel (0) target = $region25
    $region24: #{tpu_custom_call.1} parent=1 // pred_region
      _
    $region25: #{tpu_custom_call.1} parent=1 // pred_fallthru
      _
    // Predicated region
    $region26: #{tpu_custom_call.1} parent=1 // pred_check
      _
    $region27: #{tpu_custom_call.1} parent=1 // pred_check_branch
      %38 = sbr.rel (0) target = $region29
    $region28: #{tpu_custom_call.1} parent=1 // pred_region
      _
    $region29: #{tpu_custom_call.1} parent=1 // pred_fallthru
      _
    // Predicated region
    $region30: #{tpu_custom_call.1} parent=1 // pred_check
      _
    $region31: #{tpu_custom_call.1} parent=1 // pred_check_branch
      %40 = sbr.rel (0) target = $region33
    $region32: #{tpu_custom_call.1} parent=1 // pred_region
      _
    $region33: #{tpu_custom_call.1} parent=1 // pred_fallthru
      _
    // Predicated region
    $region34: #{tpu_custom_call.1} parent=1 // pred_check
      _
    $region35: #{tpu_custom_call.1} parent=1 // pred_check_branch
      %42 = sbr.rel (0) target = $region37
    $region36: #{tpu_custom_call.1} parent=1 // pred_region
      _
    $region37: #{tpu_custom_call.1} parent=1 // pred_fallthru
      _
    // Predicated region
    $region38: #{tpu_custom_call.1} parent=1 // pred_check
      _
    $region39: #{tpu_custom_call.1} parent=1 // pred_check_branch
      %44 = sbr.rel (0) target = $region41
    $region40: #{tpu_custom_call.1} parent=1 // pred_region
      %46 = dma.done [#allocation6], 896
    $region41: #{tpu_custom_call.1} parent=1 // pred_fallthru
      _
    %v48 = vld [vmem:[#allocation5] sm:$0xff]
    %v49 = vld [vmem:[#allocation5 + $0x8] sm:$0xff]
    %v50 = vld [vmem:[#allocation5 + $0x10] sm:$0xff]
    %v51 = vld [vmem:[#allocation5 + $0x18] sm:$0xff]
    %v52 = vld [vmem:[#allocation5 + $0x20] sm:$0xff]
    %v53 = vld [vmem:[#allocation5 + $0x28] sm:$0xff]
    %60 = vrot.lane.b32.xlu0 %v48, 17
    %v61 = vpop.permute.xlu0 %60
    %62 = vrot.lane.b32.xlu0 %v49, 17
    %v63 = vpop.permute.xlu0 %62
    %64 = vrot.lane.b32.xlu0 %v50, 17
    %v65 = vpop.permute.xlu0 %64
    %66 = vrot.lane.b32.xlu0 %v51, 17
    %v67 = vpop.permute.xlu0 %66
    %68 = vrot.lane.b32.xlu0 %v52, 17
    %v69 = vpop.permute.xlu0 %68
    %70 = vrot.lane.b32.xlu0 %v53, 17
    %v71 = vpop.permute.xlu0 %70
    %vm72 = vcmask 138240
    %v73 = vsel %vm72, %v61, %v63
    %v74 = vsel %vm72, %v63, %v65
    %v75 = vsel %vm72, %v65, %v67
    %v76 = vsel %vm72, %v67, %v69
    %v77 = vsel %vm72, %v69, %v71
    %83 = vst [vmem:[#allocation3] sm:$0xff] %v73
    %84 = vst [vmem:[#allocation3 + $0x8] sm:$0xff] %v74
    %85 = vst [vmem:[#allocation3 + $0x10] sm:$0xff] %v75
    %86 = vst [vmem:[#allocation3 + $0x18] sm:$0xff] %v76
    %87 = vst [vmem:[#allocation3 + $0x20] sm:$0xff] %v77
    %v88 = vld [vmem:[#allocation5] sm:$0xff]
    %v89 = vld [vmem:[#allocation5 + $0x8] sm:$0xff]
    %v90 = vld [vmem:[#allocation5 + $0x10] sm:$0xff]
    %v91 = vld [vmem:[#allocation5 + $0x18] sm:$0xff]
    %v92 = vld [vmem:[#allocation5 + $0x20] sm:$0xff]
    %v93 = vld [vmem:[#allocation5 + $0x28] sm:$0xff]
    %100 = vrot.lane.b32.xlu0 %v88, 16
    %v101 = vpop.permute.xlu0 %100
    %102 = vrot.lane.b32.xlu0 %v89, 16
    %v103 = vpop.permute.xlu0 %102
    %104 = vrot.lane.b32.xlu0 %v90, 16
    %v105 = vpop.permute.xlu0 %104
    %106 = vrot.lane.b32.xlu0 %v91, 16
    %v107 = vpop.permute.xlu0 %106
    %108 = vrot.lane.b32.xlu0 %v92, 16
    %v109 = vpop.permute.xlu0 %108
    %110 = vrot.lane.b32.xlu0 %v93, 16
    %v111 = vpop.permute.xlu0 %110
    %vm112 = vcmask 130048
    %v113 = vsel %vm112, %v101, %v103
    %v114 = vsel %vm112, %v103, %v105
    %v115 = vsel %vm112, %v105, %v107
    %v116 = vsel %vm112, %v107, %v109
    %v117 = vsel %vm112, %v109, %v111
    %123 = vst [vmem:[#allocation3 + $0x28] sm:$0xff] %v113
    %124 = vst [vmem:[#allocation3 + $0x30] sm:$0xff] %v114
    %125 = vst [vmem:[#allocation3 + $0x38] sm:$0xff] %v115
    %126 = vst [vmem:[#allocation3 + $0x40] sm:$0xff] %v116
    %127 = vst [vmem:[#allocation3 + $0x48] sm:$0xff] %v117
    %v128 = vld [vmem:[#allocation5] sm:$0xff]
    %v129 = vld [vmem:[#allocation5 + $0x8] sm:$0xff]
    %v130 = vld [vmem:[#allocation5 + $0x10] sm:$0xff]
    %v131 = vld [vmem:[#allocation5 + $0x18] sm:$0xff]
    %v132 = vld [vmem:[#allocation5 + $0x20] sm:$0xff]
    %v133 = vld [vmem:[#allocation5 + $0x28] sm:$0xff]
    %140 = vrot.lane.b32.xlu0 %v128, 15
    %v141 = vpop.permute.xlu0 %140
    %142 = vrot.lane.b32.xlu0 %v129, 15
    %v143 = vpop.permute.xlu0 %142
    %144 = vrot.lane.b32.xlu0 %v130, 15
    %v145 = vpop.permute.xlu0 %144
    %146 = vrot.lane.b32.xlu0 %v131, 15
    %v147 = vpop.permute.xlu0 %146
    %148 = vrot.lane.b32.xlu0 %v132, 15
    %v149 = vpop.permute.xlu0 %148
    %150 = vrot.lane.b32.xlu0 %v133, 15
    %v151 = vpop.permute.xlu0 %150
    %vm152 = vcmask 121856
    %v153 = vsel %vm152, %v141, %v143
    %v154 = vsel %vm152, %v143, %v145
    %v155 = vsel %vm152, %v145, %v147
    %v156 = vsel %vm152, %v147, %v149
    %v157 = vsel %vm152, %v149, %v151
    %163 = vst [vmem:[#allocation3 + $0x50] sm:$0xff] %v153
    %164 = vst [vmem:[#allocation3 + $0x58] sm:$0xff] %v154
    %165 = vst [vmem:[#allocation3 + $0x60] sm:$0xff] %v155
    %166 = vst [vmem:[#allocation3 + $0x68] sm:$0xff] %v156
    %167 = vst [vmem:[#allocation3 + $0x70] sm:$0xff] %v157
    %v168 = vld [vmem:[#allocation5] sm:$0xff]
    %v169 = vld [vmem:[#allocation5 + $0x8] sm:$0xff]
    %v170 = vld [vmem:[#allocation5 + $0x10] sm:$0xff]
    %v171 = vld [vmem:[#allocation5 + $0x18] sm:$0xff]
    %v172 = vld [vmem:[#allocation5 + $0x20] sm:$0xff]
    %v173 = vld [vmem:[#allocation5 + $0x28] sm:$0xff]
    %180 = vrot.lane.b32.xlu0 %v168, 1
    %v181 = vpop.permute.xlu0 %180
    %182 = vrot.lane.b32.xlu0 %v169, 1
    %v183 = vpop.permute.xlu0 %182
    %184 = vrot.lane.b32.xlu0 %v170, 1
    %v185 = vpop.permute.xlu0 %184
    %186 = vrot.lane.b32.xlu0 %v171, 1
    %v187 = vpop.permute.xlu0 %186
    %188 = vrot.lane.b32.xlu0 %v172, 1
    %v189 = vpop.permute.xlu0 %188
    %190 = vrot.lane.b32.xlu0 %v173, 1
    %v191 = vpop.permute.xlu0 %190
    %vm192 = vcmask 7168
    %v193 = vsel %vm192, %v181, %v183
    %v194 = vsel %vm192, %v183, %v185
    %v195 = vsel %vm192, %v185, %v187
    %v196 = vsel %vm192, %v187, %v189
    %v197 = vsel %vm192, %v189, %v191
    %203 = vst [vmem:[#allocation3 + $0x78] sm:$0xff] %v193
    %204 = vst [vmem:[#allocation3 + $0x80] sm:$0xff] %v194
    %205 = vst [vmem:[#allocation3 + $0x88] sm:$0xff] %v195
    %206 = vst [vmem:[#allocation3 + $0x90] sm:$0xff] %v196
    %207 = vst [vmem:[#allocation3 + $0x98] sm:$0xff] %v197
    %v208 = vld [vmem:[#allocation5 + $0x8] sm:$0xff]
    %v209 = vld [vmem:[#allocation5 + $0x10] sm:$0xff]
    %v210 = vld [vmem:[#allocation5 + $0x18] sm:$0xff]
    %v211 = vld [vmem:[#allocation5 + $0x20] sm:$0xff]
    %v212 = vld [vmem:[#allocation5 + $0x28] sm:$0xff]
    %213 = vst [vmem:[#allocation3 + $0xa0] sm:$0xff] %v208
    %214 = vst [vmem:[#allocation3 + $0xa8] sm:$0xff] %v209
    %215 = vst [vmem:[#allocation3 + $0xb0] sm:$0xff] %v210
    %216 = vst [vmem:[#allocation3 + $0xb8] sm:$0xff] %v211
    %217 = vst [vmem:[#allocation3 + $0xc0] sm:$0xff] %v212
    %v218 = vld [vmem:[#allocation5 + $0x8] sm:$0xff]
    %v219 = vld [vmem:[#allocation5 + $0x10] sm:$0xff]
    %v220 = vld [vmem:[#allocation5 + $0x18] sm:$0xff]
    %v221 = vld [vmem:[#allocation5 + $0x20] sm:$0xff]
    %v222 = vld [vmem:[#allocation5 + $0x28] sm:$0xff]
    %v223 = vld [vmem:[#allocation5 + $0x30] sm:$0xff]
    %230 = vrot.lane.b32.xlu0 %v218, 127
    %v231 = vpop.permute.xlu0 %230
    %232 = vrot.lane.b32.xlu0 %v219, 127
    %v233 = vpop.permute.xlu0 %232
    %234 = vrot.lane.b32.xlu0 %v220, 127
    %v235 = vpop.permute.xlu0 %234
    %236 = vrot.lane.b32.xlu0 %v221, 127
    %v237 = vpop.permute.xlu0 %236
    %238 = vrot.lane.b32.xlu0 %v222, 127
    %v239 = vpop.permute.xlu0 %238
    %240 = vrot.lane.b32.xlu0 %v223, 127
    %v241 = vpop.permute.xlu0 %240
    %vm242 = vcmask 1039360
    %v243 = vsel %vm242, %v231, %v233
    %v244 = vsel %vm242, %v233, %v235
    %v245 = vsel %vm242, %v235, %v237
    %v246 = vsel %vm242, %v237, %v239
    %v247 = vsel %vm242, %v239, %v241
    %253 = vst [vmem:[#allocation3 + $0xc8] sm:$0xff] %v243
    %254 = vst [vmem:[#allocation3 + $0xd0] sm:$0xff] %v244
    %255 = vst [vmem:[#allocation3 + $0xd8] sm:$0xff] %v245
    %256 = vst [vmem:[#allocation3 + $0xe0] sm:$0xff] %v246
    %257 = vst [vmem:[#allocation3 + $0xe8] sm:$0xff] %v247
    %v258 = vld [vmem:[#allocation5 + $0x8] sm:$0xff]
    %v259 = vld [vmem:[#allocation5 + $0x10] sm:$0xff]
    %v260 = vld [vmem:[#allocation5 + $0x18] sm:$0xff]
    %v261 = vld [vmem:[#allocation5 + $0x20] sm:$0xff]
    %v262 = vld [vmem:[#allocation5 + $0x28] sm:$0xff]
    %v263 = vld [vmem:[#allocation5 + $0x30] sm:$0xff]
    %270 = vrot.lane.b32.xlu0 %v258, 113
    %v271 = vpop.permute.xlu0 %270
    %272 = vrot.lane.b32.xlu0 %v259, 113
    %v273 = vpop.permute.xlu0 %272
    %274 = vrot.lane.b32.xlu0 %v260, 113
    %v275 = vpop.permute.xlu0 %274
    %276 = vrot.lane.b32.xlu0 %v261, 113
    %v277 = vpop.permute.xlu0 %276
    %278 = vrot.lane.b32.xlu0 %v262, 113
    %v279 = vpop.permute.xlu0 %278
    %280 = vrot.lane.b32.xlu0 %v263, 113
    %v281 = vpop.permute.xlu0 %280
    %vm282 = vcmask 924672
    %v283 = vsel %vm282, %v271, %v273
    %v284 = vsel %vm282, %v273, %v275
    %v285 = vsel %vm282, %v275, %v277
    %v286 = vsel %vm282, %v277, %v279
    %v287 = vsel %vm282, %v279, %v281
    %293 = vst [vmem:[#allocation3 + $0xf0] sm:$0xff] %v283
    %294 = vst [vmem:[#allocation3 + $0xf8] sm:$0xff] %v284
    %295 = vst [vmem:[#allocation3 + $0x100] sm:$0xff] %v285
    %296 = vst [vmem:[#allocation3 + $0x108] sm:$0xff] %v286
    %297 = vst [vmem:[#allocation3 + $0x110] sm:$0xff] %v287
    %v298 = vld [vmem:[#allocation5 + $0x8] sm:$0xff]
    %v299 = vld [vmem:[#allocation5 + $0x10] sm:$0xff]
    %v300 = vld [vmem:[#allocation5 + $0x18] sm:$0xff]
    %v301 = vld [vmem:[#allocation5 + $0x20] sm:$0xff]
    %v302 = vld [vmem:[#allocation5 + $0x28] sm:$0xff]
    %v303 = vld [vmem:[#allocation5 + $0x30] sm:$0xff]
    %310 = vrot.lane.b32.xlu0 %v298, 112
    %v311 = vpop.permute.xlu0 %310
    %312 = vrot.lane.b32.xlu0 %v299, 112
    %v313 = vpop.permute.xlu0 %312
    %314 = vrot.lane.b32.xlu0 %v300, 112
    %v315 = vpop.permute.xlu0 %314
    %316 = vrot.lane.b32.xlu0 %v301, 112
    %v317 = vpop.permute.xlu0 %316
    %318 = vrot.lane.b32.xlu0 %v302, 112
    %v319 = vpop.permute.xlu0 %318
    %320 = vrot.lane.b32.xlu0 %v303, 112
    %v321 = vpop.permute.xlu0 %320
    %vm322 = vcmask 916480
    %v323 = vsel %vm322, %v311, %v313
    %v324 = vsel %vm322, %v313, %v315
    %v325 = vsel %vm322, %v315, %v317
    %v326 = vsel %vm322, %v317, %v319
    %v327 = vsel %vm322, %v319, %v321
    %333 = vst [vmem:[#allocation3 + $0x118] sm:$0xff] %v323
    %334 = vst [vmem:[#allocation3 + $0x120] sm:$0xff] %v324
    %335 = vst [vmem:[#allocation3 + $0x128] sm:$0xff] %v325
    %336 = vst [vmem:[#allocation3 + $0x130] sm:$0xff] %v326
    %337 = vst [vmem:[#allocation3 + $0x138] sm:$0xff] %v327
    %v338 = vld [vmem:[#allocation5 + $0x8] sm:$0xff]
    %v339 = vld [vmem:[#allocation5 + $0x10] sm:$0xff]
    %v340 = vld [vmem:[#allocation5 + $0x18] sm:$0xff]
    %v341 = vld [vmem:[#allocation5 + $0x20] sm:$0xff]
    %v342 = vld [vmem:[#allocation5 + $0x28] sm:$0xff]
    %v343 = vld [vmem:[#allocation5 + $0x30] sm:$0xff]
    %350 = vrot.lane.b32.xlu0 %v338, 111
    %v351 = vpop.permute.xlu0 %350
    %352 = vrot.lane.b32.xlu0 %v339, 111
    %v353 = vpop.permute.xlu0 %352
    %354 = vrot.lane.b32.xlu0 %v340, 111
    %v355 = vpop.permute.xlu0 %354
    %356 = vrot.lane.b32.xlu0 %v341, 111
    %v357 = vpop.permute.xlu0 %356
    %358 = vrot.lane.b32.xlu0 %v342, 111
    %v359 = vpop.permute.xlu0 %358
    %360 = vrot.lane.b32.xlu0 %v343, 111
    %v361 = vpop.permute.xlu0 %360
    %vm362 = vcmask 908288
    %v363 = vsel %vm362, %v351, %v353
    %v364 = vsel %vm362, %v353, %v355
    %v365 = vsel %vm362, %v355, %v357
    %v366 = vsel %vm362, %v357, %v359
    %v367 = vsel %vm362, %v359, %v361
    %373 = vst [vmem:[#allocation3 + $0x140] sm:$0xff] %v363
    %374 = vst [vmem:[#allocation3 + $0x148] sm:$0xff] %v364
    %375 = vst [vmem:[#allocation3 + $0x150] sm:$0xff] %v365
    %376 = vst [vmem:[#allocation3 + $0x158] sm:$0xff] %v366
    %377 = vst [vmem:[#allocation3 + $0x160] sm:$0xff] %v367
    %v378 = vld [vmem:[%s1] sm:$0xf]
    %v379 = vld [vmem:[#allocation3] sm:$0xff]
    %v380 = vld [vmem:[#allocation3 + $0x8] sm:$0xff]
    %v381 = vld [vmem:[#allocation3 + $0x10] sm:$0xff]
    %v382 = vld [vmem:[#allocation3 + $0x18] sm:$0xff]
    %v383 = vld [vmem:[#allocation3 + $0x20] sm:$0xff]
    %v384 = vld [vmem:[#allocation3 + $0x28] sm:$0xff]
    %v385 = vld [vmem:[#allocation3 + $0x30] sm:$0xff]
    %v386 = vld [vmem:[#allocation3 + $0x38] sm:$0xff]
    %v387 = vld [vmem:[#allocation3 + $0x40] sm:$0xff]
    %v388 = vld [vmem:[#allocation3 + $0x48] sm:$0xff]
    %v389 = vld [vmem:[#allocation3 + $0x50] sm:$0xff]
    %v390 = vld [vmem:[#allocation3 + $0x58] sm:$0xff]
    %v391 = vld [vmem:[#allocation3 + $0x60] sm:$0xff]
    %v392 = vld [vmem:[#allocation3 + $0x68] sm:$0xff]
    %v393 = vld [vmem:[#allocation3 + $0x70] sm:$0xff]
    %v394 = vld [vmem:[#allocation3 + $0x78] sm:$0xff]
    %v395 = vld [vmem:[#allocation3 + $0x80] sm:$0xff]
    %v396 = vld [vmem:[#allocation3 + $0x88] sm:$0xff]
    %v397 = vld [vmem:[#allocation3 + $0x90] sm:$0xff]
    %v398 = vld [vmem:[#allocation3 + $0x98] sm:$0xff]
    %v399 = vld [vmem:[#allocation3 + $0xa0] sm:$0xff]
    %v400 = vld [vmem:[#allocation3 + $0xa8] sm:$0xff]
    %v401 = vld [vmem:[#allocation3 + $0xb0] sm:$0xff]
    %v402 = vld [vmem:[#allocation3 + $0xb8] sm:$0xff]
    %v403 = vld [vmem:[#allocation3 + $0xc0] sm:$0xff]
    %v404 = vld [vmem:[#allocation3 + $0xc8] sm:$0xff]
    %v405 = vld [vmem:[#allocation3 + $0xd0] sm:$0xff]
    %v406 = vld [vmem:[#allocation3 + $0xd8] sm:$0xff]
    %v407 = vld [vmem:[#allocation3 + $0xe0] sm:$0xff]
    %v408 = vld [vmem:[#allocation3 + $0xe8] sm:$0xff]
    %v409 = vld [vmem:[#allocation3 + $0xf0] sm:$0xff]
    %v410 = vld [vmem:[#allocation3 + $0xf8] sm:$0xff]
    %v411 = vld [vmem:[#allocation3 + $0x100] sm:$0xff]
    %v412 = vld [vmem:[#allocation3 + $0x108] sm:$0xff]
    %v413 = vld [vmem:[#allocation3 + $0x110] sm:$0xff]
    %v414 = vld [vmem:[#allocation3 + $0x118] sm:$0xff]
    %v415 = vld [vmem:[#allocation3 + $0x120] sm:$0xff]
    %v416 = vld [vmem:[#allocation3 + $0x128] sm:$0xff]
    %v417 = vld [vmem:[#allocation3 + $0x130] sm:$0xff]
    %v418 = vld [vmem:[#allocation3 + $0x138] sm:$0xff]
    %v419 = vld [vmem:[#allocation3 + $0x140] sm:$0xff]
    %v420 = vld [vmem:[#allocation3 + $0x148] sm:$0xff]
    %v421 = vld [vmem:[#allocation3 + $0x150] sm:$0xff]
    %v422 = vld [vmem:[#allocation3 + $0x158] sm:$0xff]
    %v423 = vld [vmem:[#allocation3 + $0x160] sm:$0xff]
    %v424 = vpack.c.bf16 %v384, %v379
    %v425 = vpack.c.bf16 %v385, %v380
    %v426 = vpack.c.bf16 %v386, %v381
    %v427 = vpack.c.bf16 %v387, %v382
    %v428 = vpack.c.bf16 %v388, %v383
    %v429 = vpack.c.bf16 %v394, %v389
    %v430 = vpack.c.bf16 %v395, %v390
    %v431 = vpack.c.bf16 %v396, %v391
    %v432 = vpack.c.bf16 %v397, %v392
    %v433 = vpack.c.bf16 %v398, %v393
    %v434 = vpack.c.bf16 %v404, %v399
    %v435 = vpack.c.bf16 %v405, %v400
    %v436 = vpack.c.bf16 %v406, %v401
    %v437 = vpack.c.bf16 %v407, %v402
    %v438 = vpack.c.bf16 %v408, %v403
    %v439 = vpack.c.bf16 %v414, %v409
    %v440 = vpack.c.bf16 %v415, %v410
    %v441 = vpack.c.bf16 %v416, %v411
    %v442 = vpack.c.bf16 %v417, %v412
    %v443 = vpack.c.bf16 %v418, %v413
    %v444 = vpack.c.bf16 %v419, %v419
    %v445 = vpack.c.bf16 %v420, %v420
    %v446 = vpack.c.bf16 %v421, %v421
    %v447 = vpack.c.bf16 %v422, %v422
    %v448 = vpack.c.bf16 %v423, %v423
    %vm449 = vcmask 588800
    %v451 = vsel %vm449, %v378, 0
    %vm453 = vcmask 1043456
    %v455 = vsel %vm453, %v444, 0
    %v458 = vsel %vm453, %v445, 0
    %v461 = vsel %vm453, %v446, 0
    %v464 = vsel %vm453, %v447, 0
    %v467 = vsel %vm453, %v448, 0
    %469 = vmatpush.bf16.msra.mxu0 0
    %470 = vmatpush.bf16.msra.mxu0 0
    %471 = vmatpush.bf16.msra.mxu0 0
    %472 = vmatpush.bf16.msra.mxu0 %v455
    %473 = vmatpush.bf16.msra.mxu0 %v439
    %474 = vmatpush.bf16.msra.mxu0 %v434
    %475 = vmatpush.bf16.msra.mxu0 %v429
    %476 = vmatpush.bf16.msra.mxu0 %v424
    %477 = vmatmul.bf16.gmra.mxu0 %v451
    %v478 = vpop.f32.mrf.mxu0
    %v479 = vadd.f32 0.0, %v478
    %v480 = vpop.f32.mrf.mxu0
    %481 = vdwg.mxu0
    %482 = vmatpush.bf16.msra.mxu0 0
    %483 = vmatpush.bf16.msra.mxu0 0
    %484 = vmatpush.bf16.msra.mxu0 0
    %485 = vmatpush.bf16.msra.mxu0 %v458
    %486 = vmatpush.bf16.msra.mxu0 %v440
    %487 = vmatpush.bf16.msra.mxu0 %v435
    %488 = vmatpush.bf16.msra.mxu0 %v430
    %489 = vmatpush.bf16.msra.mxu0 %v425
    %490 = vmatmul.bf16.gmra.mxu0 %v451
    %v491 = vpop.f32.mrf.mxu0
    %v492 = vadd.f32 0.0, %v491
    %v493 = vpop.f32.mrf.mxu0
    %494 = vdwg.mxu0
    %495 = vmatpush.bf16.msra.mxu0 0
    %496 = vmatpush.bf16.msra.mxu0 0
    %497 = vmatpush.bf16.msra.mxu0 0
    %498 = vmatpush.bf16.msra.mxu0 %v461
    %499 = vmatpush.bf16.msra.mxu0 %v441
    %500 = vmatpush.bf16.msra.mxu0 %v436
    %501 = vmatpush.bf16.msra.mxu0 %v431
    %502 = vmatpush.bf16.msra.mxu0 %v426
    %503 = vmatmul.bf16.gmra.mxu0 %v451
    %v504 = vpop.f32.mrf.mxu0
    %v505 = vadd.f32 0.0, %v504
    %v506 = vpop.f32.mrf.mxu0
    %507 = vdwg.mxu0
    %508 = vmatpush.bf16.msra.mxu0 0
    %509 = vmatpush.bf16.msra.mxu0 0
    %510 = vmatpush.bf16.msra.mxu0 0
    %511 = vmatpush.bf16.msra.mxu0 %v464
    %512 = vmatpush.bf16.msra.mxu0 %v442
    %513 = vmatpush.bf16.msra.mxu0 %v437
    %514 = vmatpush.bf16.msra.mxu0 %v432
    %515 = vmatpush.bf16.msra.mxu0 %v427
    %516 = vmatmul.bf16.gmra.mxu0 %v451
    %v517 = vpop.f32.mrf.mxu0
    %v518 = vadd.f32 0.0, %v517
    %v519 = vpop.f32.mrf.mxu0
    %520 = vdwg.mxu0
    %521 = vmatpush.bf16.msra.mxu0 0
    %522 = vmatpush.bf16.msra.mxu0 0
    %523 = vmatpush.bf16.msra.mxu0 0
    %524 = vmatpush.bf16.msra.mxu0 %v467
    %525 = vmatpush.bf16.msra.mxu0 %v443
    %526 = vmatpush.bf16.msra.mxu0 %v438
    %527 = vmatpush.bf16.msra.mxu0 %v433
    %528 = vmatpush.bf16.msra.mxu0 %v428
    %529 = vmatmul.bf16.gmra.mxu0 %v451
    %v530 = vpop.f32.mrf.mxu0
    %v531 = vadd.f32 0.0, %v530
    %v532 = vpop.f32.mrf.mxu0
    %533 = vdwg.mxu0
    %v534 = vld [vmem:[%s7] sm:$0x1f]
    %v535 = vld [vmem:[%s2] sm:$0xff]
    %v536 = vld [vmem:[%s3] sm:$0xff]
    %v538 = vperm.slane %v534, 0
    %v539 = vperm.slane %v534, 1
    %v540 = vperm.slane %v534, 2
    %v541 = vperm.slane %v534, 3
    %v542 = vperm.slane %v534, 4
    %v548 = vmul.f32 %v479, %v538
    %v549 = vmul.f32 %v492, %v539
    %v550 = vmul.f32 %v505, %v540
    %v551 = vmul.f32 %v518, %v541
    %v552 = vmul.f32 %v531, %v542
    %v553 = vadd.f32 %v548, %v549
    %v554 = vadd.f32 %v553, %v550
    %v555 = vadd.f32 %v554, %v551
    %v556 = vadd.f32 %v555, %v552
    %557 = vadd.xlane.f32.xlu0 %v556
    %v558 = vpop.xlane.xlu0 %557
    %v559 = vmul.f32 %v558, 0.002232143
    %v560 = vsub.f32 %v479, %v559
    %v561 = vsub.f32 %v492, %v559
    %v562 = vsub.f32 %v505, %v559
    %v563 = vsub.f32 %v518, %v559
    %v564 = vsub.f32 %v531, %v559
    %v565 = vmul.f32 %v560, %v538
    %v566 = vmul.f32 %v561, %v539
    %v567 = vmul.f32 %v562, %v540
    %v568 = vmul.f32 %v563, %v541
    %v569 = vmul.f32 %v564, %v542
    %v570 = vmul.f32 %v565, %v565
    %v571 = vmul.f32 %v566, %v566
    %v572 = vmul.f32 %v567, %v567
    %v573 = vmul.f32 %v568, %v568
    %v574 = vmul.f32 %v569, %v569
    %v575 = vadd.f32 %v570, %v571
    %v576 = vadd.f32 %v575, %v572
    %v577 = vadd.f32 %v576, %v573
    %v578 = vadd.f32 %v577, %v574
    %579 = vadd.xlane.f32.xlu0 %v578
    %v580 = vpop.xlane.xlu0 %579
    %v581 = vmul.f32 %v580, 0.002232143
    %v582 = vadd.f32 %v581, 1e-05
    %v583 = vrsqrt.pop %v582
    %v584 = vmul.f32 %v583, %v582
    %v585 = vmul.f32 %v584, %v583
    %v586 = vmul.f32 0.5, %v585
    %v587 = vsub.f32 1.5, %v586
    %v588 = vmul.f32 %v583, %v587
    %vm589 = vweird.f32 %v582
    %vm590 = vweird.f32 %v583
    %vm591 = vmor %vm589, %vm590
    %v592 = vsel %vm591, %v583, %v588
    %v593 = vmul.f32 %v535, %v592
    %v594 = vmul.f32 %v559, %v593
    %v595 = vsub.f32 %v536, %v594
    %597 = vset.pattern.permute.xlu0 0
    %598 = vperm.xlu0 %597, %v593
    %v599 = vpop.permute.xlu0 %598
    %v601 = vmul.f32 %v479, %v599
    %v602 = vmul.f32 %v492, %v599
    %v603 = vmul.f32 %v505, %v599
    %v604 = vmul.f32 %v518, %v599
    %v605 = vmul.f32 %v531, %v599
    %607 = vset.pattern.permute.xlu0 0
    %608 = vperm.xlu0 %607, %v595
    %v609 = vpop.permute.xlu0 %608
    %v611 = vadd.f32 %v601, %v609
    %v612 = vadd.f32 %v602, %v609
    %v613 = vadd.f32 %v603, %v609
    %v614 = vadd.f32 %v604, %v609
    %v615 = vadd.f32 %v605, %v609
    %v616 = vmax.f32 %v611, 0.0
    %v617 = vmax.f32 %v612, 0.0
    %v618 = vmax.f32 %v613, 0.0
    %v619 = vmax.f32 %v614, 0.0
    %v620 = vmax.f32 %v615, 0.0
    %v621 = vmul.f32 %v616, %v538
    %v622 = vmul.f32 %v617, %v539
    %v623 = vmul.f32 %v618, %v540
    %v624 = vmul.f32 %v619, %v541
    %v625 = vmul.f32 %v620, %v542
    %626 = vst [vmem:[#allocation2] sm:$0xff] 0.0
    %627 = vst [vmem:[#allocation2 + $0x30] sm:$0xff] 0.0
    %628 = vst [vmem:[#allocation2 + $0x8] sm:$0xff] %v621
    %629 = vst [vmem:[#allocation2 + $0x10] sm:$0xff] %v622
    %630 = vst [vmem:[#allocation2 + $0x18] sm:$0xff] %v623
    %631 = vst [vmem:[#allocation2 + $0x20] sm:$0xff] %v624
    %632 = vst [vmem:[#allocation2 + $0x28] sm:$0xff] %v625
    %v633 = vld [vmem:[#allocation2] sm:$0xff]
    %v634 = vld [vmem:[#allocation2 + $0x8] sm:$0xff]
    %v635 = vld [vmem:[#allocation2 + $0x10] sm:$0xff]
    %v636 = vld [vmem:[#allocation2 + $0x18] sm:$0xff]
    %v637 = vld [vmem:[#allocation2 + $0x20] sm:$0xff]
    %v638 = vld [vmem:[#allocation2 + $0x28] sm:$0xff]
    %645 = vrot.lane.b32.xlu0 %v633, 17
    %v646 = vpop.permute.xlu0 %645
    %647 = vrot.lane.b32.xlu0 %v634, 17
    %v648 = vpop.permute.xlu0 %647
    %649 = vrot.lane.b32.xlu0 %v635, 17
    %v650 = vpop.permute.xlu0 %649
    %651 = vrot.lane.b32.xlu0 %v636, 17
    %v652 = vpop.permute.xlu0 %651
    %653 = vrot.lane.b32.xlu0 %v637, 17
    %v654 = vpop.permute.xlu0 %653
    %655 = vrot.lane.b32.xlu0 %v638, 17
    %v656 = vpop.permute.xlu0 %655
    %v657 = vsel %vm72, %v646, %v648
    %v658 = vsel %vm72, %v648, %v650
    %v659 = vsel %vm72, %v650, %v652
    %v660 = vsel %vm72, %v652, %v654
    %v661 = vsel %vm72, %v654, %v656
    %667 = vst [vmem:[#allocation4] sm:$0xff] %v657
    %668 = vst [vmem:[#allocation4 + $0x8] sm:$0xff] %v658
    %669 = vst [vmem:[#allocation4 + $0x10] sm:$0xff] %v659
    %670 = vst [vmem:[#allocation4 + $0x18] sm:$0xff] %v660
    %671 = vst [vmem:[#allocation4 + $0x20] sm:$0xff] %v661
    %v672 = vld [vmem:[#allocation2] sm:$0xff]
    %v673 = vld [vmem:[#allocation2 + $0x8] sm:$0xff]
    %v674 = vld [vmem:[#allocation2 + $0x10] sm:$0xff]
    %v675 = vld [vmem:[#allocation2 + $0x18] sm:$0xff]
    %v676 = vld [vmem:[#allocation2 + $0x20] sm:$0xff]
    %v677 = vld [vmem:[#allocation2 + $0x28] sm:$0xff]
    %684 = vrot.lane.b32.xlu0 %v672, 16
    %v685 = vpop.permute.xlu0 %684
    %686 = vrot.lane.b32.xlu0 %v673, 16
    %v687 = vpop.permute.xlu0 %686
    %688 = vrot.lane.b32.xlu0 %v674, 16
    %v689 = vpop.permute.xlu0 %688
    %690 = vrot.lane.b32.xlu0 %v675, 16
    %v691 = vpop.permute.xlu0 %690
    %692 = vrot.lane.b32.xlu0 %v676, 16
    %v693 = vpop.permute.xlu0 %692
    %694 = vrot.lane.b32.xlu0 %v677, 16
    %v695 = vpop.permute.xlu0 %694
    %v696 = vsel %vm112, %v685, %v687
    %v697 = vsel %vm112, %v687, %v689
    %v698 = vsel %vm112, %v689, %v691
    %v699 = vsel %vm112, %v691, %v693
    %v700 = vsel %vm112, %v693, %v695
    %706 = vst [vmem:[#allocation4 + $0x28] sm:$0xff] %v696
    %707 = vst [vmem:[#allocation4 + $0x30] sm:$0xff] %v697
    %708 = vst [vmem:[#allocation4 + $0x38] sm:$0xff] %v698
    %709 = vst [vmem:[#allocation4 + $0x40] sm:$0xff] %v699
    %710 = vst [vmem:[#allocation4 + $0x48] sm:$0xff] %v700
    %v711 = vld [vmem:[#allocation2] sm:$0xff]
    %v712 = vld [vmem:[#allocation2 + $0x8] sm:$0xff]
    %v713 = vld [vmem:[#allocation2 + $0x10] sm:$0xff]
    %v714 = vld [vmem:[#allocation2 + $0x18] sm:$0xff]
    %v715 = vld [vmem:[#allocation2 + $0x20] sm:$0xff]
    %v716 = vld [vmem:[#allocation2 + $0x28] sm:$0xff]
    %723 = vrot.lane.b32.xlu0 %v711, 15
    %v724 = vpop.permute.xlu0 %723
    %725 = vrot.lane.b32.xlu0 %v712, 15
    %v726 = vpop.permute.xlu0 %725
    %727 = vrot.lane.b32.xlu0 %v713, 15
    %v728 = vpop.permute.xlu0 %727
    %729 = vrot.lane.b32.xlu0 %v714, 15
    %v730 = vpop.permute.xlu0 %729
    %731 = vrot.lane.b32.xlu0 %v715, 15
    %v732 = vpop.permute.xlu0 %731
    %733 = vrot.lane.b32.xlu0 %v716, 15
    %v734 = vpop.permute.xlu0 %733
    %v735 = vsel %vm152, %v724, %v726
    %v736 = vsel %vm152, %v726, %v728
    %v737 = vsel %vm152, %v728, %v730
    %v738 = vsel %vm152, %v730, %v732
    %v739 = vsel %vm152, %v732, %v734
    %745 = vst [vmem:[#allocation4 + $0x50] sm:$0xff] %v735
    %746 = vst [vmem:[#allocation4 + $0x58] sm:$0xff] %v736
    %747 = vst [vmem:[#allocation4 + $0x60] sm:$0xff] %v737
    %748 = vst [vmem:[#allocation4 + $0x68] sm:$0xff] %v738
    %749 = vst [vmem:[#allocation4 + $0x70] sm:$0xff] %v739
    %v750 = vld [vmem:[#allocation2] sm:$0xff]
    %v751 = vld [vmem:[#allocation2 + $0x8] sm:$0xff]
    %v752 = vld [vmem:[#allocation2 + $0x10] sm:$0xff]
    %v753 = vld [vmem:[#allocation2 + $0x18] sm:$0xff]
    %v754 = vld [vmem:[#allocation2 + $0x20] sm:$0xff]
    %v755 = vld [vmem:[#allocation2 + $0x28] sm:$0xff]
    %762 = vrot.lane.b32.xlu0 %v750, 1
    %v763 = vpop.permute.xlu0 %762
    %764 = vrot.lane.b32.xlu0 %v751, 1
    %v765 = vpop.permute.xlu0 %764
    %766 = vrot.lane.b32.xlu0 %v752, 1
    %v767 = vpop.permute.xlu0 %766
    %768 = vrot.lane.b32.xlu0 %v753, 1
    %v769 = vpop.permute.xlu0 %768
    %770 = vrot.lane.b32.xlu0 %v754, 1
    %v771 = vpop.permute.xlu0 %770
    %772 = vrot.lane.b32.xlu0 %v755, 1
    %v773 = vpop.permute.xlu0 %772
    %v774 = vsel %vm192, %v763, %v765
    %v775 = vsel %vm192, %v765, %v767
    %v776 = vsel %vm192, %v767, %v769
    %v777 = vsel %vm192, %v769, %v771
    %v778 = vsel %vm192, %v771, %v773
    %784 = vst [vmem:[#allocation4 + $0x78] sm:$0xff] %v774
    %785 = vst [vmem:[#allocation4 + $0x80] sm:$0xff] %v775
    %786 = vst [vmem:[#allocation4 + $0x88] sm:$0xff] %v776
    %787 = vst [vmem:[#allocation4 + $0x90] sm:$0xff] %v777
    %788 = vst [vmem:[#allocation4 + $0x98] sm:$0xff] %v778
    %v789 = vld [vmem:[#allocation2 + $0x8] sm:$0xff]
    %v790 = vld [vmem:[#allocation2 + $0x10] sm:$0xff]
    %v791 = vld [vmem:[#allocation2 + $0x18] sm:$0xff]
    %v792 = vld [vmem:[#allocation2 + $0x20] sm:$0xff]
    %v793 = vld [vmem:[#allocation2 + $0x28] sm:$0xff]
    %794 = vst [vmem:[#allocation4 + $0xa0] sm:$0xff] %v789
    %795 = vst [vmem:[#allocation4 + $0xa8] sm:$0xff] %v790
    %796 = vst [vmem:[#allocation4 + $0xb0] sm:$0xff] %v791
    %797 = vst [vmem:[#allocation4 + $0xb8] sm:$0xff] %v792
    %798 = vst [vmem:[#allocation4 + $0xc0] sm:$0xff] %v793
    %v799 = vld [vmem:[#allocation2 + $0x8] sm:$0xff]
    %v800 = vld [vmem:[#allocation2 + $0x10] sm:$0xff]
    %v801 = vld [vmem:[#allocation2 + $0x18] sm:$0xff]
    %v802 = vld [vmem:[#allocation2 + $0x20] sm:$0xff]
    %v803 = vld [vmem:[#allocation2 + $0x28] sm:$0xff]
    %v804 = vld [vmem:[#allocation2 + $0x30] sm:$0xff]
    %811 = vrot.lane.b32.xlu0 %v799, 127
    %v812 = vpop.permute.xlu0 %811
    %813 = vrot.lane.b32.xlu0 %v800, 127
    %v814 = vpop.permute.xlu0 %813
    %815 = vrot.lane.b32.xlu0 %v801, 127
    %v816 = vpop.permute.xlu0 %815
    %817 = vrot.lane.b32.xlu0 %v802, 127
    %v818 = vpop.permute.xlu0 %817
    %819 = vrot.lane.b32.xlu0 %v803, 127
    %v820 = vpop.permute.xlu0 %819
    %821 = vrot.lane.b32.xlu0 %v804, 127
    %v822 = vpop.permute.xlu0 %821
    %v823 = vsel %vm242, %v812, %v814
    %v824 = vsel %vm242, %v814, %v816
    %v825 = vsel %vm242, %v816, %v818
    %v826 = vsel %vm242, %v818, %v820
    %v827 = vsel %vm242, %v820, %v822
    %833 = vst [vmem:[#allocation4 + $0xc8] sm:$0xff] %v823
    %834 = vst [vmem:[#allocation4 + $0xd0] sm:$0xff] %v824
    %835 = vst [vmem:[#allocation4 + $0xd8] sm:$0xff] %v825
    %836 = vst [vmem:[#allocation4 + $0xe0] sm:$0xff] %v826
    %837 = vst [vmem:[#allocation4 + $0xe8] sm:$0xff] %v827
    %v838 = vld [vmem:[#allocation2 + $0x8] sm:$0xff]
    %v839 = vld [vmem:[#allocation2 + $0x10] sm:$0xff]
    %v840 = vld [vmem:[#allocation2 + $0x18] sm:$0xff]
    %v841 = vld [vmem:[#allocation2 + $0x20] sm:$0xff]
    %v842 = vld [vmem:[#allocation2 + $0x28] sm:$0xff]
    %v843 = vld [vmem:[#allocation2 + $0x30] sm:$0xff]
    %850 = vrot.lane.b32.xlu0 %v838, 113
    %v851 = vpop.permute.xlu0 %850
    %852 = vrot.lane.b32.xlu0 %v839, 113
    %v853 = vpop.permute.xlu0 %852
    %854 = vrot.lane.b32.xlu0 %v840, 113
    %v855 = vpop.permute.xlu0 %854
    %856 = vrot.lane.b32.xlu0 %v841, 113
    %v857 = vpop.permute.xlu0 %856
    %858 = vrot.lane.b32.xlu0 %v842, 113
    %v859 = vpop.permute.xlu0 %858
    %860 = vrot.lane.b32.xlu0 %v843, 113
    %v861 = vpop.permute.xlu0 %860
    %v862 = vsel %vm282, %v851, %v853
    %v863 = vsel %vm282, %v853, %v855
    %v864 = vsel %vm282, %v855, %v857
    %v865 = vsel %vm282, %v857, %v859
    %v866 = vsel %vm282, %v859, %v861
    %872 = vst [vmem:[#allocation4 + $0xf0] sm:$0xff] %v862
    %873 = vst [vmem:[#allocation4 + $0xf8] sm:$0xff] %v863
    %874 = vst [vmem:[#allocation4 + $0x100] sm:$0xff] %v864
    %875 = vst [vmem:[#allocation4 + $0x108] sm:$0xff] %v865
    %876 = vst [vmem:[#allocation4 + $0x110] sm:$0xff] %v866
    %v877 = vld [vmem:[#allocation2 + $0x8] sm:$0xff]
    %v878 = vld [vmem:[#allocation2 + $0x10] sm:$0xff]
    %v879 = vld [vmem:[#allocation2 + $0x18] sm:$0xff]
    %v880 = vld [vmem:[#allocation2 + $0x20] sm:$0xff]
    %v881 = vld [vmem:[#allocation2 + $0x28] sm:$0xff]
    %v882 = vld [vmem:[#allocation2 + $0x30] sm:$0xff]
    %889 = vrot.lane.b32.xlu0 %v877, 112
    %v890 = vpop.permute.xlu0 %889
    %891 = vrot.lane.b32.xlu0 %v878, 112
    %v892 = vpop.permute.xlu0 %891
    %893 = vrot.lane.b32.xlu0 %v879, 112
    %v894 = vpop.permute.xlu0 %893
    %895 = vrot.lane.b32.xlu0 %v880, 112
    %v896 = vpop.permute.xlu0 %895
    %897 = vrot.lane.b32.xlu0 %v881, 112
    %v898 = vpop.permute.xlu0 %897
    %899 = vrot.lane.b32.xlu0 %v882, 112
    %v900 = vpop.permute.xlu0 %899
    %v901 = vsel %vm322, %v890, %v892
    %v902 = vsel %vm322, %v892, %v894
    %v903 = vsel %vm322, %v894, %v896
    %v904 = vsel %vm322, %v896, %v898
    %v905 = vsel %vm322, %v898, %v900
    %911 = vst [vmem:[#allocation4 + $0x118] sm:$0xff] %v901
    %912 = vst [vmem:[#allocation4 + $0x120] sm:$0xff] %v902
    %913 = vst [vmem:[#allocation4 + $0x128] sm:$0xff] %v903
    %914 = vst [vmem:[#allocation4 + $0x130] sm:$0xff] %v904
    %915 = vst [vmem:[#allocation4 + $0x138] sm:$0xff] %v905
    %v916 = vld [vmem:[#allocation2 + $0x8] sm:$0xff]
    %v917 = vld [vmem:[#allocation2 + $0x10] sm:$0xff]
    %v918 = vld [vmem:[#allocation2 + $0x18] sm:$0xff]
    %v919 = vld [vmem:[#allocation2 + $0x20] sm:$0xff]
    %v920 = vld [vmem:[#allocation2 + $0x28] sm:$0xff]
    %v921 = vld [vmem:[#allocation2 + $0x30] sm:$0xff]
    %928 = vrot.lane.b32.xlu0 %v916, 111
    %v929 = vpop.permute.xlu0 %928
    %930 = vrot.lane.b32.xlu0 %v917, 111
    %v931 = vpop.permute.xlu0 %930
    %932 = vrot.lane.b32.xlu0 %v918, 111
    %v933 = vpop.permute.xlu0 %932
    %934 = vrot.lane.b32.xlu0 %v919, 111
    %v935 = vpop.permute.xlu0 %934
    %936 = vrot.lane.b32.xlu0 %v920, 111
    %v937 = vpop.permute.xlu0 %936
    %938 = vrot.lane.b32.xlu0 %v921, 111
    %v939 = vpop.permute.xlu0 %938
    %v940 = vsel %vm362, %v929, %v931
    %v941 = vsel %vm362, %v931, %v933
    %v942 = vsel %vm362, %v933, %v935
    %v943 = vsel %vm362, %v935, %v937
    %v944 = vsel %vm362, %v937, %v939
    %950 = vst [vmem:[#allocation4 + $0x140] sm:$0xff] %v940
    %951 = vst [vmem:[#allocation4 + $0x148] sm:$0xff] %v941
    %952 = vst [vmem:[#allocation4 + $0x150] sm:$0xff] %v942
    %953 = vst [vmem:[#allocation4 + $0x158] sm:$0xff] %v943
    %954 = vst [vmem:[#allocation4 + $0x160] sm:$0xff] %v944
    %v955 = vld [vmem:[%s4] sm:$0xf]
    %v956 = vld [vmem:[#allocation4] sm:$0xff]
    %v957 = vld [vmem:[#allocation4 + $0x8] sm:$0xff]
    %v958 = vld [vmem:[#allocation4 + $0x10] sm:$0xff]
    %v959 = vld [vmem:[#allocation4 + $0x18] sm:$0xff]
    %v960 = vld [vmem:[#allocation4 + $0x20] sm:$0xff]
    %v961 = vld [vmem:[#allocation4 + $0x28] sm:$0xff]
    %v962 = vld [vmem:[#allocation4 + $0x30] sm:$0xff]
    %v963 = vld [vmem:[#allocation4 + $0x38] sm:$0xff]
    %v964 = vld [vmem:[#allocation4 + $0x40] sm:$0xff]
    %v965 = vld [vmem:[#allocation4 + $0x48] sm:$0xff]
    %v966 = vld [vmem:[#allocation4 + $0x50] sm:$0xff]
    %v967 = vld [vmem:[#allocation4 + $0x58] sm:$0xff]
    %v968 = vld [vmem:[#allocation4 + $0x60] sm:$0xff]
    %v969 = vld [vmem:[#allocation4 + $0x68] sm:$0xff]
    %v970 = vld [vmem:[#allocation4 + $0x70] sm:$0xff]
    %v971 = vld [vmem:[#allocation4 + $0x78] sm:$0xff]
    %v972 = vld [vmem:[#allocation4 + $0x80] sm:$0xff]
    %v973 = vld [vmem:[#allocation4 + $0x88] sm:$0xff]
    %v974 = vld [vmem:[#allocation4 + $0x90] sm:$0xff]
    %v975 = vld [vmem:[#allocation4 + $0x98] sm:$0xff]
    %v976 = vld [vmem:[#allocation4 + $0xa0] sm:$0xff]
    %v977 = vld [vmem:[#allocation4 + $0xa8] sm:$0xff]
    %v978 = vld [vmem:[#allocation4 + $0xb0] sm:$0xff]
    %v979 = vld [vmem:[#allocation4 + $0xb8] sm:$0xff]
    %v980 = vld [vmem:[#allocation4 + $0xc0] sm:$0xff]
    %v981 = vld [vmem:[#allocation4 + $0xc8] sm:$0xff]
    %v982 = vld [vmem:[#allocation4 + $0xd0] sm:$0xff]
    %v983 = vld [vmem:[#allocation4 + $0xd8] sm:$0xff]
    %v984 = vld [vmem:[#allocation4 + $0xe0] sm:$0xff]
    %v985 = vld [vmem:[#allocation4 + $0xe8] sm:$0xff]
    %v986 = vld [vmem:[#allocation4 + $0xf0] sm:$0xff]
    %v987 = vld [vmem:[#allocation4 + $0xf8] sm:$0xff]
    %v988 = vld [vmem:[#allocation4 + $0x100] sm:$0xff]
    %v989 = vld [vmem:[#allocation4 + $0x108] sm:$0xff]
    %v990 = vld [vmem:[#allocation4 + $0x110] sm:$0xff]
    %v991 = vld [vmem:[#allocation4 + $0x118] sm:$0xff]
    %v992 = vld [vmem:[#allocation4 + $0x120] sm:$0xff]
    %v993 = vld [vmem:[#allocation4 + $0x128] sm:$0xff]
    %v994 = vld [vmem:[#allocation4 + $0x130] sm:$0xff]
    %v995 = vld [vmem:[#allocation4 + $0x138] sm:$0xff]
    %v996 = vld [vmem:[#allocation4 + $0x140] sm:$0xff]
    %v997 = vld [vmem:[#allocation4 + $0x148] sm:$0xff]
    %v998 = vld [vmem:[#allocation4 + $0x150] sm:$0xff]
    %v999 = vld [vmem:[#allocation4 + $0x158] sm:$0xff]
    %v1000 = vld [vmem:[#allocation4 + $0x160] sm:$0xff]
    %v1001 = vpack.c.bf16 %v961, %v956
    %v1002 = vpack.c.bf16 %v962, %v957
    %v1003 = vpack.c.bf16 %v963, %v958
    %v1004 = vpack.c.bf16 %v964, %v959
    %v1005 = vpack.c.bf16 %v965, %v960
    %v1006 = vpack.c.bf16 %v971, %v966
    %v1007 = vpack.c.bf16 %v972, %v967
    %v1008 = vpack.c.bf16 %v973, %v968
    %v1009 = vpack.c.bf16 %v974, %v969
    %v1010 = vpack.c.bf16 %v975, %v970
    %v1011 = vpack.c.bf16 %v981, %v976
    %v1012 = vpack.c.bf16 %v982, %v977
    %v1013 = vpack.c.bf16 %v983, %v978
    %v1014 = vpack.c.bf16 %v984, %v979
    %v1015 = vpack.c.bf16 %v985, %v980
    %v1016 = vpack.c.bf16 %v991, %v986
    %v1017 = vpack.c.bf16 %v992, %v987
    %v1018 = vpack.c.bf16 %v993, %v988
    %v1019 = vpack.c.bf16 %v994, %v989
    %v1020 = vpack.c.bf16 %v995, %v990
    %v1021 = vpack.c.bf16 %v996, %v996
    %v1022 = vpack.c.bf16 %v997, %v997
    %v1023 = vpack.c.bf16 %v998, %v998
    %v1024 = vpack.c.bf16 %v999, %v999
    %v1025 = vpack.c.bf16 %v1000, %v1000
    %v1027 = vsel %vm449, %v955, 0
    %v1030 = vsel %vm453, %v1021, 0
    %v1033 = vsel %vm453, %v1022, 0
    %v1036 = vsel %vm453, %v1023, 0
    %v1039 = vsel %vm453, %v1024, 0
    %v1042 = vsel %vm453, %v1025, 0
    %1044 = vmatpush.bf16.msra.mxu0 0
    %1045 = vmatpush.bf16.msra.mxu0 0
    %1046 = vmatpush.bf16.msra.mxu0 0
    %1047 = vmatpush.bf16.msra.mxu0 %v1030
    %1048 = vmatpush.bf16.msra.mxu0 %v1016
    %1049 = vmatpush.bf16.msra.mxu0 %v1011
    %1050 = vmatpush.bf16.msra.mxu0 %v1006
    %1051 = vmatpush.bf16.msra.mxu0 %v1001
    %1052 = vmatmul.bf16.gmra.mxu0 %v1027
    %v1053 = vpop.f32.mrf.mxu0
    %v1054 = vadd.f32 0.0, %v1053
    %v1055 = vpop.f32.mrf.mxu0
    %1056 = vdwg.mxu0
    %1057 = vmatpush.bf16.msra.mxu0 0
    %1058 = vmatpush.bf16.msra.mxu0 0
    %1059 = vmatpush.bf16.msra.mxu0 0
    %1060 = vmatpush.bf16.msra.mxu0 %v1033
    %1061 = vmatpush.bf16.msra.mxu0 %v1017
    %1062 = vmatpush.bf16.msra.mxu0 %v1012
    %1063 = vmatpush.bf16.msra.mxu0 %v1007
    %1064 = vmatpush.bf16.msra.mxu0 %v1002
    %1065 = vmatmul.bf16.gmra.mxu0 %v1027
    %v1066 = vpop.f32.mrf.mxu0
    %v1067 = vadd.f32 0.0, %v1066
    %v1068 = vpop.f32.mrf.mxu0
    %1069 = vdwg.mxu0
    %1070 = vmatpush.bf16.msra.mxu0 0
    %1071 = vmatpush.bf16.msra.mxu0 0
    %1072 = vmatpush.bf16.msra.mxu0 0
    %1073 = vmatpush.bf16.msra.mxu0 %v1036
    %1074 = vmatpush.bf16.msra.mxu0 %v1018
    %1075 = vmatpush.bf16.msra.mxu0 %v1013
    %1076 = vmatpush.bf16.msra.mxu0 %v1008
    %1077 = vmatpush.bf16.msra.mxu0 %v1003
    %1078 = vmatmul.bf16.gmra.mxu0 %v1027
    %v1079 = vpop.f32.mrf.mxu0
    %v1080 = vadd.f32 0.0, %v1079
    %v1081 = vpop.f32.mrf.mxu0
    %1082 = vdwg.mxu0
    %1083 = vmatpush.bf16.msra.mxu0 0
    %1084 = vmatpush.bf16.msra.mxu0 0
    %1085 = vmatpush.bf16.msra.mxu0 0
    %1086 = vmatpush.bf16.msra.mxu0 %v1039
    %1087 = vmatpush.bf16.msra.mxu0 %v1019
    %1088 = vmatpush.bf16.msra.mxu0 %v1014
    %1089 = vmatpush.bf16.msra.mxu0 %v1009
    %1090 = vmatpush.bf16.msra.mxu0 %v1004
    %1091 = vmatmul.bf16.gmra.mxu0 %v1027
    %v1092 = vpop.f32.mrf.mxu0
    %v1093 = vadd.f32 0.0, %v1092
    %v1094 = vpop.f32.mrf.mxu0
    %1095 = vdwg.mxu0
    %1096 = vmatpush.bf16.msra.mxu0 0
    %1097 = vmatpush.bf16.msra.mxu0 0
    %1098 = vmatpush.bf16.msra.mxu0 0
    %1099 = vmatpush.bf16.msra.mxu0 %v1042
    %1100 = vmatpush.bf16.msra.mxu0 %v1020
    %1101 = vmatpush.bf16.msra.mxu0 %v1015
    %1102 = vmatpush.bf16.msra.mxu0 %v1010
    %1103 = vmatpush.bf16.msra.mxu0 %v1005
    %1104 = vmatmul.bf16.gmra.mxu0 %v1027
    %v1105 = vpop.f32.mrf.mxu0
    %v1106 = vadd.f32 0.0, %v1105
    %v1107 = vpop.f32.mrf.mxu0
    %1108 = vdwg.mxu0
    %v1109 = vld [vmem:[%s8] sm:$0x1f]
    %v1110 = vld [vmem:[%s5] sm:$0xff]
    %v1111 = vld [vmem:[%s6] sm:$0xff]
    %v1113 = vperm.slane %v1109, 0
    %v1114 = vperm.slane %v1109, 1
    %v1115 = vperm.slane %v1109, 2
    %v1116 = vperm.slane %v1109, 3
    %v1117 = vperm.slane %v1109, 4
    %v1123 = vmul.f32 %v1054, %v1113
    %v1124 = vmul.f32 %v1067, %v1114
    %v1125 = vmul.f32 %v1080, %v1115
    %v1126 = vmul.f32 %v1093, %v1116
    %v1127 = vmul.f32 %v1106, %v1117
    %v1128 = vadd.f32 %v1123, %v1124
    %v1129 = vadd.f32 %v1128, %v1125
    %v1130 = vadd.f32 %v1129, %v1126
    %v1131 = vadd.f32 %v1130, %v1127
    %1132 = vadd.xlane.f32.xlu0 %v1131
    %v1133 = vpop.xlane.xlu0 %1132
    %v1134 = vmul.f32 %v1133, 0.0026041667
    %v1135 = vsub.f32 %v1054, %v1134
    %v1136 = vsub.f32 %v1067, %v1134
    %v1137 = vsub.f32 %v1080, %v1134
    %v1138 = vsub.f32 %v1093, %v1134
    %v1139 = vsub.f32 %v1106, %v1134
    %v1140 = vmul.f32 %v1135, %v1113
    %v1141 = vmul.f32 %v1136, %v1114
    %v1142 = vmul.f32 %v1137, %v1115
    %v1143 = vmul.f32 %v1138, %v1116
    %v1144 = vmul.f32 %v1139, %v1117
    %v1145 = vmul.f32 %v1140, %v1140
    %v1146 = vmul.f32 %v1141, %v1141
    %v1147 = vmul.f32 %v1142, %v1142
    %v1148 = vmul.f32 %v1143, %v1143
    %v1149 = vmul.f32 %v1144, %v1144
    %v1150 = vadd.f32 %v1145, %v1146
    %v1151 = vadd.f32 %v1150, %v1147
    %v1152 = vadd.f32 %v1151, %v1148
    %v1153 = vadd.f32 %v1152, %v1149
    %1154 = vadd.xlane.f32.xlu0 %v1153
    %v1155 = vpop.xlane.xlu0 %1154
    %v1156 = vmul.f32 %v1155, 0.0026041667
    %v1157 = vadd.f32 %v1156, 1e-05
    %v1158 = vrsqrt.pop %v1157
    %v1159 = vmul.f32 %v1158, %v1157
    %v1160 = vmul.f32 %v1159, %v1158
    %v1161 = vmul.f32 0.5, %v1160
    %v1162 = vsub.f32 1.5, %v1161
    %v1163 = vmul.f32 %v1158, %v1162
    %vm1164 = vweird.f32 %v1157
    %vm1165 = vweird.f32 %v1158
    %vm1166 = vmor %vm1164, %vm1165
    %v1167 = vsel %vm1166, %v1158, %v1163
    %v1168 = vmul.f32 %v1110, %v1167
    %v1169 = vmul.f32 %v1134, %v1168
    %v1170 = vsub.f32 %v1111, %v1169
    %1172 = vset.pattern.permute.xlu0 0
    %1173 = vperm.xlu0 %1172, %v1168
    %v1174 = vpop.permute.xlu0 %1173
    %v1176 = vmul.f32 %v1054, %v1174
    %v1177 = vmul.f32 %v1067, %v1174
    %v1178 = vmul.f32 %v1080, %v1174
    %v1179 = vmul.f32 %v1093, %v1174
    %v1180 = vmul.f32 %v1106, %v1174
    %1182 = vset.pattern.permute.xlu0 0
    %1183 = vperm.xlu0 %1182, %v1170
    %v1184 = vpop.permute.xlu0 %1183
    %v1186 = vadd.f32 %v1176, %v1184
    %v1187 = vadd.f32 %v1177, %v1184
    %v1188 = vadd.f32 %v1178, %v1184
    %v1189 = vadd.f32 %v1179, %v1184
    %v1190 = vadd.f32 %v1180, %v1184
    %v1191 = vmax.f32 %v1186, 0.0
    %v1192 = vmax.f32 %v1187, 0.0
    %v1193 = vmax.f32 %v1188, 0.0
    %v1194 = vmax.f32 %v1189, 0.0
    %v1195 = vmax.f32 %v1190, 0.0
    %1196 = vst [vmem:[#allocation8] sm:$0xff] %v1191
    %1197 = vst [vmem:[#allocation8 + $0x8] sm:$0xff] %v1192
    %1198 = vst [vmem:[#allocation8 + $0x10] sm:$0xff] %v1193
    %1199 = vst [vmem:[#allocation8 + $0x18] sm:$0xff] %v1194
    %1200 = vst [vmem:[#allocation8 + $0x20] sm:$0xff] %v1195
    // Predicated region
    $region42: #{tpu_custom_call.1} parent=1 // pred_check
      _
    $region43: #{tpu_custom_call.1} parent=1 // pred_check_branch
      %1202 = sbr.rel (0) target = $region45
    $region44: #{tpu_custom_call.1} parent=1 // pred_region
      %1204 = vsyncadd [#allocation7], 0
      %s1206 = sshll.u32 [#allocation8], 4
      %s1207 = int_to_ptr.vmem [resolvable:$true] %s1206
      %s1208 = sshll.u32 %s9, 4
      %s1209 = int_to_ptr.hbm [resolvable:$true] %s1208
      %1211 = dma.vmem_to_hbm [thread:$0]  %s1207, 640, %s1209, [#allocation7]
    $region45: #{tpu_custom_call.1} parent=1 // pred_fallthru
      _
    // Predicated region
    $region46: #{tpu_custom_call.1} parent=1 // pred_check
      _
    $region47: #{tpu_custom_call.1} parent=1 // pred_check_branch
      %1213 = sbr.rel (0) target = $region49
    $region48: #{tpu_custom_call.1} parent=1 // pred_region
      %1215 = dma.done [#allocation7], 640
    $region49: #{tpu_custom_call.1} parent=1 // pred_fallthru
      _
    %1216 = vsyncpa [#allocation6], 1
    %1217 = vsyncpa [#allocation7], 1

</llo_original>
